<compile_context>
chip_gen: v5e
topology: v5e:2x2
jax: 0.10.0
libtpu: 0.0.40
codegen_flags: <defaults>
</compile_context>

<pallas_src>
import functools

import jax
import jax.numpy as jnp
from jax.experimental import pallas as pl
from jax.experimental.pallas import tpu as pltpu


def cbam_kernel(x_ref, w1_ref, b1_ref, w2t_ref, b2_ref, m_ref, o_ref):
    x = x_ref[...]                                   # (Bt, C, HW) f32, lane-dense
    _, C, HW = x.shape

    # ---------------- Channel attention (squeeze-excite) ----------------
    # Tiny MLP on the VPU/XLU (too small to fill the MXU); the attention
    # vector stays sublane-resident (Bt, C, 1) so no lane<->sublane relayout
    # is needed before the `x * att` broadcast.
    avg = jnp.sum(x, axis=2, keepdims=True) * (1.0 / HW)                   # (Bt, C, 1)
    h = jnp.sum(avg * w1_ref[...][None, :, :], axis=1) + b1_ref[...]       # (Bt, hid)
    h = jnp.maximum(h, 0.0)
    logits = jnp.sum(w2t_ref[...][None, :, :] * h[:, None, :],
                     axis=2, keepdims=True) + b2_ref[...][None, :, :]      # (Bt, C, 1)
    att = jax.nn.sigmoid(logits)
    xc = x * att                                                           # (Bt, C, HW)

    # ---------------- Spatial attention ----------------
    mx = jnp.max(xc, axis=1)                                               # (Bt, HW)
    mn = jnp.sum(xc, axis=1) * (1.0 / C)                                   # (Bt, HW)

    # 7x7 "same" conv (2 in-ch -> 1 out, zero pad, no bias) as ONE fused MXU
    # matmul: bf16 operands, f32 accumulation, operator precomputed in the
    # wrapper as a (2*HW, HW) matrix.
    maps = jnp.concatenate([mx, mn], axis=-1).astype(jnp.bfloat16)         # (Bt, 2*HW)
    acc = jnp.dot(maps, m_ref[...], preferred_element_type=jnp.float32)    # (Bt, HW)
    sa = jax.nn.sigmoid(jnp.maximum(acc, 0.0))                             # (Bt, HW)

    # ---------------- Output (single lane-dense, unmasked store) ----------------
    o_ref[...] = xc * sa[:, None, :]


# ----------------------------------------------------------------------------
# Parameter repacking (one-time, hoisted out of the per-call path).
# ----------------------------------------------------------------------------
def make_spatial_operator(wc, H, W, dtype=jnp.bfloat16):
    """Repack Conv2d(2, 1, k, padding=k//2, bias=False) weights into a single
    (2*HW, HW) matrix so conv(maps)_flat == concat([mx, mn], -1) @ M_cat."""
    KH, KW = wc.shape[2], wc.shape[3]
    HW = H * W
    idx = jnp.arange(HW)
    oi, oj = idx // W, idx % W                      # output pixel coords
    si, sj = idx // W, idx % W                      # source pixel coords
    di = si[:, None] - oi[None, :] + KH // 2        # (HW_src, HW_out)
    dj = sj[:, None] - oj[None, :] + KW // 2
    valid = (di >= 0) & (di < KH) & (dj >= 0) & (dj < KW)
    di = jnp.clip(di, 0, KH - 1)
    dj = jnp.clip(dj, 0, KW - 1)
    taps = wc[0][:, di, dj]                          # (2, HW, HW)
    m = jnp.where(valid[None], taps, 0.0)
    return jnp.concatenate([m[0], m[1]], axis=0).astype(dtype)   # (2*HW, HW)


def prepare_cbam_params(w1, b1, w2, b2, wc, H, W):
    """Build the kernel-side parameter tuple once per weight set."""
    C, hidden = w1.shape
    return (
        jnp.asarray(w1, jnp.float32),                       # (C, hidden)
        jnp.asarray(b1, jnp.float32).reshape(1, hidden),    # (1, hidden)
        jnp.asarray(w2, jnp.float32).T,                     # (C, hidden)
        jnp.asarray(b2, jnp.float32).reshape(C, 1),         # (C, 1)
        make_spatial_operator(jnp.asarray(wc, jnp.float32), H, W),  # (2*HW, HW) bf16
    )


# ----------------------------------------------------------------------------
# Generation-aware tuning helpers (best-effort; safe fallbacks).
# ----------------------------------------------------------------------------
def _vmem_limit_bytes():
    try:
        cap = int(pltpu.get_tpu_info().vmem_capacity_bytes)
        return min(max(32 * 1024 * 1024, int(cap * 0.75)), 96 * 1024 * 1024)
    except Exception:
        return 32 * 1024 * 1024


def _tensorcores_per_chip():
    try:
        info = pltpu.get_tpu_info()
        for name in ("num_tensorcores", "tensorcores_per_chip", "num_cores",
                     "core_count"):
            n = getattr(info, name, None)
            if isinstance(n, int) and 1 <= n <= 8:
                return n
    except Exception:
        pass
    try:
        kind = jax.devices()[0].device_kind.lower()
        if "v4" in kind or "v7" in kind or "7x" in kind:
            return 2
    except Exception:
        pass
    return 1


def _pick_block_b(B, C, HW, n_cores, vmem_limit, m_bytes):
    # v5e/v6e (1 TC): single grid step. v7x (2 TC): one parallel step per core.
    bb = B if n_cores <= 1 else max(1, B // n_cores)
    while B % bb:
        bb -= 1

    def fits(b):
        tile = b * C * HW * 4
        return 2 * (2 * tile) + 2 * m_bytes < int(0.8 * vmem_limit)

    while bb > 1 and not fits(bb):
        bb = max(1, bb // 2)
        while B % bb:
            bb -= 1
    return bb


def _const_spec(shape, single_buffer):
    ndim = len(shape)
    index_map = lambda b: (0,) * ndim
    if single_buffer:
        return pl.BlockSpec(shape, index_map, pipeline_mode=pl.Buffered(1))
    return pl.BlockSpec(shape, index_map)


# ----------------------------------------------------------------------------
# Pallas entry point.
# ----------------------------------------------------------------------------
@functools.partial(jax.jit,
                   static_argnames=("block_b", "single_buffer_consts", "vmem_limit"))
def _cbam_pallas(x_flat, w1, b1r, w2t, b2c, m_cat, *, block_b,
                 single_buffer_consts, vmem_limit):
    B, C, HW = x_flat.shape
    hidden = w1.shape[1]
    sb = single_buffer_consts

    return pl.pallas_call(
        cbam_kernel,
        out_shape=jax.ShapeDtypeStruct((B, C, HW), x_flat.dtype),
        grid=(B // block_b,),
        in_specs=[
            pl.BlockSpec((block_b, C, HW), lambda b: (b, 0, 0)),
            _const_spec((C, hidden), sb),
            _const_spec((1, hidden), sb),
            _const_spec((C, hidden), sb),
            _const_spec((C, 1), sb),
            _const_spec((2 * HW, HW), sb),
        ],
        out_specs=pl.BlockSpec((block_b, C, HW), lambda b: (b, 0, 0)),
        compiler_params=pltpu.CompilerParams(
            dimension_semantics=("parallel",),
            vmem_limit_bytes=vmem_limit,
        ),
    )(x_flat, w1, b1r, w2t, b2c, m_cat)


def cbam_forward(x, params, *, block_b=None):
    """x: (B, C, H, W) f32; params from prepare_cbam_params()."""
    w1, b1r, w2t, b2c, m_cat = params
    B, C, H, W = x.shape
    HW = H * W
    assert HW % 128 == 0 and C % 8 == 0, "flattened layout must stay (8,128)-tileable"

    vmem_limit = _vmem_limit_bytes()
    n_cores = _tensorcores_per_chip()
    if block_b is None:
        block_b = _pick_block_b(B, C, HW, n_cores, vmem_limit,
                                m_bytes=m_cat.size * m_cat.dtype.itemsize)
    assert B % block_b == 0, "batch must be a multiple of block_b"

    x_flat = x.reshape(B, C, HW)                     # free reshape for contiguous NCHW
    try:
        out = _cbam_pallas(x_flat, w1, b1r, w2t, b2c, m_cat,
                           block_b=block_b, single_buffer_consts=True,
                           vmem_limit=vmem_limit)
    except Exception:
        # Fallback if this JAX build rejects pipeline_mode=pl.Buffered(1).
        out = _cbam_pallas(x_flat, w1, b1r, w2t, b2c, m_cat,
                           block_b=block_b, single_buffer_consts=False,
                           vmem_limit=vmem_limit)
    return out.reshape(B, C, H, W)


# ----------------------------------------------------------------------------
# Pure-JAX reference (matches the PyTorch CBAM forward, f32 throughout).
# ----------------------------------------------------------------------------
def cbam_reference(x, w1, b1, w2, b2, wc_full):
    avg = jnp.mean(x, axis=(2, 3))                          # (B, C)
    h = jax.nn.relu(avg @ w1 + b1)                          # (B, hidden)
    att = jax.nn.sigmoid(h @ w2 + b2)                       # (B, C)
    xc = x * att[:, :, None, None]
    mx = jnp.max(xc, axis=1, keepdims=True)
    mn = jnp.mean(xc, axis=1, keepdims=True)
    sa_in = jnp.concatenate([mx, mn], axis=1)               # (B, 2, H, W)
    conv = jax.lax.conv_general_dilated(
        sa_in, wc_full, (1, 1), ((3, 3), (3, 3)),
        dimension_numbers=("NCHW", "OIHW", "NCHW"))
    sa = jax.nn.sigmoid(jax.nn.relu(conv))                  # (B, 1, H, W)
    return sa * xc


if __name__ == "__main__":
    B, C, H, W = 2, 32, 16, 16
    reduction_ratio = 16
    hidden = C // reduction_ratio                            # 2

    key = jax.random.PRNGKey(0)
    k = jax.random.split(key, 6)
    x = jax.random.normal(k[0], (B, C, H, W), jnp.float32)
    # Deterministic synthetic parameters (shapes implied by the module __init__).
    w1 = jax.random.normal(k[1], (C, hidden), jnp.float32) * 0.2   # Linear(C, C//r).weight^T
    b1 = jax.random.normal(k[2], (1, hidden), jnp.float32) * 0.1
    w2 = jax.random.normal(k[3], (hidden, C), jnp.float32) * 0.2   # Linear(C//r, C).weight^T
    b2 = jax.random.normal(k[4], (1, C), jnp.float32) * 0.1
    wc = jax.random.normal(k[5], (1, 2, 7, 7), jnp.float32) * 0.05 # Conv2d(2,1,7,bias=False)

    params = prepare_cbam_params(w1, b1, w2, b2, wc, H, W)   # one-time repack
    out = cbam_forward(x, params)
    out = jax.block_until_ready(out)

    ref = cbam_reference(x, w1, b1, w2, b2, wc)
    err = float(jnp.max(jnp.abs(out - ref)))
    # Tolerance loosened vs. the pure-f32 path: the spatial-conv matmul now runs
    # with bf16 MXU operands (f32 accumulation), per the performance review.
    assert jnp.allclose(out, ref, atol=2e-2, rtol=2e-2), f"max abs err {err}"
    print("KERNEL_OK")
</pallas_src>

<mosaic_0001>
module attributes {stable_mosaic.version = 11 : i64} {
  func.func @cbam_kernel(%arg0: i32, %arg1: memref<2x32x256xf32, #tpu.memory_space<vmem>>, %arg2: memref<32x2xf32, #tpu.memory_space<vmem>>, %arg3: memref<1x2xf32, #tpu.memory_space<vmem>>, %arg4: memref<32x2xf32, #tpu.memory_space<vmem>>, %arg5: memref<32x1xf32, #tpu.memory_space<vmem>>, %arg6: memref<512x256xbf16, #tpu.memory_space<vmem>>, %arg7: memref<2x32x256xf32, #tpu.memory_space<vmem>>) attributes {dimension_semantics = [#tpu.dimension_semantics<parallel>], iteration_bounds = array<i64: 1>, scalar_prefetch = 0 : i64, scratch_operands = 0 : i64, tpu.core_type = #tpu.core_type<tc>, window_params = [{transform_indices = @transform_0, window_bounds = array<i64: 2, 32, 256>}, {pipeline_mode = #tpu.pipeline_mode<synchronous>, transform_indices = @transform_1, window_bounds = array<i64: 32, 2>}, {pipeline_mode = #tpu.pipeline_mode<synchronous>, transform_indices = @transform_2, window_bounds = array<i64: 1, 2>}, {pipeline_mode = #tpu.pipeline_mode<synchronous>, transform_indices = @transform_3, window_bounds = array<i64: 32, 2>}, {pipeline_mode = #tpu.pipeline_mode<synchronous>, transform_indices = @transform_4, window_bounds = array<i64: 32, 1>}, {pipeline_mode = #tpu.pipeline_mode<synchronous>, transform_indices = @transform_5, window_bounds = array<i64: 512, 256>}, {transform_indices = @transform_6, window_bounds = array<i64: 2, 32, 256>}]} {
    %c0 = arith.constant 0 : index
    %c0_0 = arith.constant 0 : index
    %c0_1 = arith.constant 0 : index
    %0 = vector.load %arg1[%c0, %c0_0, %c0_1] : memref<2x32x256xf32, #tpu.memory_space<vmem>>, vector<2x32x256xf32>
    %cst = arith.constant dense<0.000000e+00> : vector<2x32xf32>
    %1 = vector.multi_reduction <add>, %0, %cst [2] : vector<2x32x256xf32> to vector<2x32xf32>
    %2 = vector.shape_cast %1 : vector<2x32xf32> to vector<2x32x1xf32>
    %cst_2 = arith.constant 3.906250e-03 : f32
    %3 = vector.broadcast %cst_2 : f32 to vector<2x32x1xf32>
    %4 = arith.mulf %2, %3 : vector<2x32x1xf32>
    %c0_3 = arith.constant 0 : index
    %c0_4 = arith.constant 0 : index
    %5 = vector.load %arg2[%c0_3, %c0_4] : memref<32x2xf32, #tpu.memory_space<vmem>>, vector<32x2xf32>
    %6 = vector.shape_cast %5 : vector<32x2xf32> to vector<1x32x2xf32>
    %7 = vector.broadcast %4 : vector<2x32x1xf32> to vector<2x32x2xf32>
    %8 = vector.broadcast %6 : vector<1x32x2xf32> to vector<2x32x2xf32>
    %9 = arith.mulf %7, %8 : vector<2x32x2xf32>
    %cst_5 = arith.constant dense<0.000000e+00> : vector<2x2xf32>
    %10 = vector.multi_reduction <add>, %9, %cst_5 [1] : vector<2x32x2xf32> to vector<2x2xf32>
    %c0_6 = arith.constant 0 : index
    %c0_7 = arith.constant 0 : index
    %11 = vector.load %arg3[%c0_6, %c0_7] : memref<1x2xf32, #tpu.memory_space<vmem>>, vector<1x2xf32>
    %12 = vector.broadcast %11 : vector<1x2xf32> to vector<2x2xf32>
    %13 = arith.addf %10, %12 : vector<2x2xf32>
    %cst_8 = arith.constant 0.000000e+00 : f32
    %14 = vector.broadcast %cst_8 : f32 to vector<2x2xf32>
    %15 = arith.maximumf %13, %14 : vector<2x2xf32>
    %c0_9 = arith.constant 0 : index
    %c0_10 = arith.constant 0 : index
    %16 = vector.load %arg4[%c0_9, %c0_10] : memref<32x2xf32, #tpu.memory_space<vmem>>, vector<32x2xf32>
    %17 = vector.shape_cast %16 : vector<32x2xf32> to vector<1x32x2xf32>
    %18 = vector.shape_cast %15 : vector<2x2xf32> to vector<2x1x2xf32>
    %19 = vector.broadcast %17 : vector<1x32x2xf32> to vector<2x32x2xf32>
    %20 = vector.broadcast %18 : vector<2x1x2xf32> to vector<2x32x2xf32>
    %21 = arith.mulf %19, %20 : vector<2x32x2xf32>
    %cst_11 = arith.constant dense<0.000000e+00> : vector<2x32xf32>
    %22 = vector.multi_reduction <add>, %21, %cst_11 [2] : vector<2x32x2xf32> to vector<2x32xf32>
    %23 = vector.shape_cast %22 : vector<2x32xf32> to vector<2x32x1xf32>
    %c0_12 = arith.constant 0 : index
    %c0_13 = arith.constant 0 : index
    %24 = vector.load %arg5[%c0_12, %c0_13] : memref<32x1xf32, #tpu.memory_space<vmem>>, vector<32x1xf32>
    %25 = vector.shape_cast %24 : vector<32x1xf32> to vector<1x32x1xf32>
    %26 = vector.broadcast %25 : vector<1x32x1xf32> to vector<2x32x1xf32>
    %27 = arith.addf %23, %26 : vector<2x32x1xf32>
    %28 = arith.negf %27 : vector<2x32x1xf32>
    %29 = math.exp %28 : vector<2x32x1xf32>
    %cst_14 = arith.constant 1.000000e+00 : f32
    %30 = vector.broadcast %cst_14 : f32 to vector<2x32x1xf32>
    %31 = arith.addf %30, %29 : vector<2x32x1xf32>
    %32 = arith.divf %30, %31 : vector<2x32x1xf32>
    %33 = vector.broadcast %32 : vector<2x32x1xf32> to vector<2x32x256xf32>
    %34 = arith.mulf %0, %33 : vector<2x32x256xf32>
    %cst_15 = arith.constant dense<0xFF800000> : vector<2x256xf32>
    %35 = vector.multi_reduction <maximumf>, %34, %cst_15 [1] : vector<2x32x256xf32> to vector<2x256xf32>
    %cst_16 = arith.constant dense<0.000000e+00> : vector<2x256xf32>
    %36 = vector.multi_reduction <add>, %34, %cst_16 [1] : vector<2x32x256xf32> to vector<2x256xf32>
    %cst_17 = arith.constant 3.125000e-02 : f32
    %37 = vector.broadcast %cst_17 : f32 to vector<2x256xf32>
    %38 = arith.mulf %36, %37 : vector<2x256xf32>
    %39 = tpu.concatenate %35, %38 in 1 : vector<2x256xf32>, vector<2x256xf32> -> vector<2x512xf32>
    %40 = arith.truncf %39 : vector<2x512xf32> to vector<2x512xbf16>
    %c0_18 = arith.constant 0 : index
    %c0_19 = arith.constant 0 : index
    %41 = vector.load %arg6[%c0_18, %c0_19] : memref<512x256xbf16, #tpu.memory_space<vmem>>, vector<512x256xbf16>
    %cst_20 = arith.constant dense<0.000000e+00> : vector<2x256xf32>
    %42 = tpu.matmul %40, %41, %cst_20 {dimension_numbers = #tpu.dot_dimension_numbers<[1], [0], [0], [1], [0, 0, 1, 1], [], []>} : vector<2x512xbf16>, vector<512x256xbf16>, vector<2x256xf32> -> vector<2x256xf32>
    %cst_21 = arith.constant 0.000000e+00 : f32
    %43 = vector.broadcast %cst_21 : f32 to vector<2x256xf32>
    %44 = arith.maximumf %42, %43 : vector<2x256xf32>
    %45 = arith.negf %44 : vector<2x256xf32>
    %46 = math.exp %45 : vector<2x256xf32>
    %cst_22 = arith.constant 1.000000e+00 : f32
    %47 = vector.broadcast %cst_22 : f32 to vector<2x256xf32>
    %48 = arith.addf %47, %46 : vector<2x256xf32>
    %49 = arith.divf %47, %48 : vector<2x256xf32>
    %50 = vector.shape_cast %49 : vector<2x256xf32> to vector<2x1x256xf32>
    %51 = vector.broadcast %50 : vector<2x1x256xf32> to vector<2x32x256xf32>
    %52 = arith.mulf %34, %51 : vector<2x32x256xf32>
    %c0_23 = arith.constant 0 : index
    %c0_24 = arith.constant 0 : index
    %c0_25 = arith.constant 0 : index
    %53 = vector.load %arg7[%c0_23, %c0_24, %c0_25] : memref<2x32x256xf32, #tpu.memory_space<vmem>>, vector<2x32x256xf32>
    tpu.vector_store %arg7[%c0_23, %c0_24, %c0_25], %52 {strides = array<i32>} : memref<2x32x256xf32, #tpu.memory_space<vmem>>, vector<2x32x256xf32>,
    return
  }
  func.func @transform_0(%arg0: i32) -> (i32, i32, i32) {
    %c0_i32 = arith.constant 0 : i32
    %c0_i32_0 = arith.constant 0 : i32
    %c0_i32_1 = arith.constant 0 : i32
    return %arg0, %c0_i32, %c0_i32_0 : i32, i32, i32
  }
  func.func @transform_1(%arg0: i32) -> (i32, i32) {
    %c0_i32 = arith.constant 0 : i32
    %c0_i32_0 = arith.constant 0 : i32
    %c0_i32_1 = arith.constant 0 : i32
    return %c0_i32, %c0_i32_0 : i32, i32
  }
  func.func @transform_2(%arg0: i32) -> (i32, i32) {
    %c0_i32 = arith.constant 0 : i32
    %c0_i32_0 = arith.constant 0 : i32
    %c0_i32_1 = arith.constant 0 : i32
    return %c0_i32, %c0_i32_0 : i32, i32
  }
  func.func @transform_3(%arg0: i32) -> (i32, i32) {
    %c0_i32 = arith.constant 0 : i32
    %c0_i32_0 = arith.constant 0 : i32
    %c0_i32_1 = arith.constant 0 : i32
    return %c0_i32, %c0_i32_0 : i32, i32
  }
  func.func @transform_4(%arg0: i32) -> (i32, i32) {
    %c0_i32 = arith.constant 0 : i32
    %c0_i32_0 = arith.constant 0 : i32
    %c0_i32_1 = arith.constant 0 : i32
    return %c0_i32, %c0_i32_0 : i32, i32
  }
  func.func @transform_5(%arg0: i32) -> (i32, i32) {
    %c0_i32 = arith.constant 0 : i32
    %c0_i32_0 = arith.constant 0 : i32
    %c0_i32_1 = arith.constant 0 : i32
    return %c0_i32, %c0_i32_0 : i32, i32
  }
  func.func @transform_6(%arg0: i32) -> (i32, i32, i32) {
    %c0_i32 = arith.constant 0 : i32
    %c0_i32_0 = arith.constant 0 : i32
    %c0_i32_1 = arith.constant 0 : i32
    return %arg0, %c0_i32, %c0_i32_0 : i32, i32, i32
  }
}

module attributes {stable_mosaic.version = 11 : i64} {
  func.func @cbam_kernel(%arg0: i32, %arg1: memref<2x32x256xf32, #tpu.memory_space<vmem>>, %arg2: memref<32x2xf32, #tpu.memory_space<vmem>>, %arg3: memref<1x2xf32, #tpu.memory_space<vmem>>, %arg4: memref<32x2xf32, #tpu.memory_space<vmem>>, %arg5: memref<32x1xf32, #tpu.memory_space<vmem>>, %arg6: memref<512x256xbf16, #tpu.memory_space<vmem>>, %arg7: memref<2x32x256xf32, #tpu.memory_space<vmem>>) attributes {dimension_semantics = [#tpu.dimension_semantics<parallel>], iteration_bounds = array<i64: 1>, scalar_prefetch = 0 : i64, scratch_operands = 0 : i64, tpu.core_type = #tpu.core_type<tc>, window_params = [{transform_indices = @transform_0, window_bounds = array<i64: 2, 32, 256>}, {pipeline_mode = #tpu.pipeline_mode<synchronous>, transform_indices = @transform_1, window_bounds = array<i64: 32, 2>}, {pipeline_mode = #tpu.pipeline_mode<synchronous>, transform_indices = @transform_2, window_bounds = array<i64: 1, 2>}, {pipeline_mode = #tpu.pipeline_mode<synchronous>, transform_indices = @transform_3, window_bounds = array<i64: 32, 2>}, {pipeline_mode = #tpu.pipeline_mode<synchronous>, transform_indices = @transform_4, window_bounds = array<i64: 32, 1>}, {pipeline_mode = #tpu.pipeline_mode<synchronous>, transform_indices = @transform_5, window_bounds = array<i64: 512, 256>}, {transform_indices = @transform_6, window_bounds = array<i64: 2, 32, 256>}]} {
    %c0 = arith.constant 0 : index
    %c0_0 = arith.constant 0 : index
    %c0_1 = arith.constant 0 : index
    %0 = vector.load %arg1[%c0, %c0_0, %c0_1] : memref<2x32x256xf32, #tpu.memory_space<vmem>>, vector<2x32x256xf32>
    %cst = arith.constant dense<0.000000e+00> : vector<2x32xf32>
    %1 = vector.multi_reduction <add>, %0, %cst [2] : vector<2x32x256xf32> to vector<2x32xf32>
    %2 = vector.shape_cast %1 : vector<2x32xf32> to vector<2x32x1xf32>
    %cst_2 = arith.constant 3.906250e-03 : f32
    %3 = vector.broadcast %cst_2 : f32 to vector<2x32x1xf32>
    %4 = arith.mulf %2, %3 : vector<2x32x1xf32>
    %c0_3 = arith.constant 0 : index
    %c0_4 = arith.constant 0 : index
    %5 = vector.load %arg2[%c0_3, %c0_4] : memref<32x2xf32, #tpu.memory_space<vmem>>, vector<32x2xf32>
    %6 = vector.shape_cast %5 : vector<32x2xf32> to vector<1x32x2xf32>
    %7 = vector.broadcast %4 : vector<2x32x1xf32> to vector<2x32x2xf32>
    %8 = vector.broadcast %6 : vector<1x32x2xf32> to vector<2x32x2xf32>
    %9 = arith.mulf %7, %8 : vector<2x32x2xf32>
    %cst_5 = arith.constant dense<0.000000e+00> : vector<2x2xf32>
    %10 = vector.multi_reduction <add>, %9, %cst_5 [1] : vector<2x32x2xf32> to vector<2x2xf32>
    %c0_6 = arith.constant 0 : index
    %c0_7 = arith.constant 0 : index
    %11 = vector.load %arg3[%c0_6, %c0_7] : memref<1x2xf32, #tpu.memory_space<vmem>>, vector<1x2xf32>
    %12 = vector.broadcast %11 : vector<1x2xf32> to vector<2x2xf32>
    %13 = arith.addf %10, %12 : vector<2x2xf32>
    %cst_8 = arith.constant 0.000000e+00 : f32
    %14 = vector.broadcast %cst_8 : f32 to vector<2x2xf32>
    %15 = arith.maximumf %13, %14 : vector<2x2xf32>
    %c0_9 = arith.constant 0 : index
    %c0_10 = arith.constant 0 : index
    %16 = vector.load %arg4[%c0_9, %c0_10] : memref<32x2xf32, #tpu.memory_space<vmem>>, vector<32x2xf32>
    %17 = vector.shape_cast %16 : vector<32x2xf32> to vector<1x32x2xf32>
    %18 = vector.shape_cast %15 : vector<2x2xf32> to vector<2x1x2xf32>
    %19 = vector.broadcast %17 : vector<1x32x2xf32> to vector<2x32x2xf32>
    %20 = vector.broadcast %18 : vector<2x1x2xf32> to vector<2x32x2xf32>
    %21 = arith.mulf %19, %20 : vector<2x32x2xf32>
    %cst_11 = arith.constant dense<0.000000e+00> : vector<2x32xf32>
    %22 = vector.multi_reduction <add>, %21, %cst_11 [2] : vector<2x32x2xf32> to vector<2x32xf32>
    %23 = vector.shape_cast %22 : vector<2x32xf32> to vector<2x32x1xf32>
    %c0_12 = arith.constant 0 : index
    %c0_13 = arith.constant 0 : index
    %24 = vector.load %arg5[%c0_12, %c0_13] : memref<32x1xf32, #tpu.memory_space<vmem>>, vector<32x1xf32>
    %25 = vector.shape_cast %24 : vector<32x1xf32> to vector<1x32x1xf32>
    %26 = vector.broadcast %25 : vector<1x32x1xf32> to vector<2x32x1xf32>
    %27 = arith.addf %23, %26 : vector<2x32x1xf32>
    %28 = arith.negf %27 : vector<2x32x1xf32>
    %29 = math.exp %28 : vector<2x32x1xf32>
    %cst_14 = arith.constant 1.000000e+00 : f32
    %30 = vector.broadcast %cst_14 : f32 to vector<2x32x1xf32>
    %31 = arith.addf %30, %29 : vector<2x32x1xf32>
    %32 = arith.divf %30, %31 : vector<2x32x1xf32>
    %33 = vector.broadcast %32 : vector<2x32x1xf32> to vector<2x32x256xf32>
    %34 = arith.mulf %0, %33 : vector<2x32x256xf32>
    %cst_15 = arith.constant dense<0xFF800000> : vector<2x256xf32>
    %35 = vector.multi_reduction <maximumf>, %34, %cst_15 [1] : vector<2x32x256xf32> to vector<2x256xf32>
    %cst_16 = arith.constant dense<0.000000e+00> : vector<2x256xf32>
    %36 = vector.multi_reduction <add>, %34, %cst_16 [1] : vector<2x32x256xf32> to vector<2x256xf32>
    %cst_17 = arith.constant 3.125000e-02 : f32
    %37 = vector.broadcast %cst_17 : f32 to vector<2x256xf32>
    %38 = arith.mulf %36, %37 : vector<2x256xf32>
    %39 = tpu.concatenate %35, %38 in 1 : vector<2x256xf32>, vector<2x256xf32> -> vector<2x512xf32>
    %40 = arith.truncf %39 : vector<2x512xf32> to vector<2x512xbf16>
    %c0_18 = arith.constant 0 : index
    %c0_19 = arith.constant 0 : index
    %41 = vector.load %arg6[%c0_18, %c0_19] : memref<512x256xbf16, #tpu.memory_space<vmem>>, vector<512x256xbf16>
    %cst_20 = arith.constant dense<0.000000e+00> : vector<2x256xf32>
    %42 = tpu.matmul %40, %41, %cst_20 {dimension_numbers = #tpu.dot_dimension_numbers<[1], [0], [0], [1], [0, 0, 1, 1], [], []>} : vector<2x512xbf16>, vector<512x256xbf16>, vector<2x256xf32> -> vector<2x256xf32>
    %cst_21 = arith.constant 0.000000e+00 : f32
    %43 = vector.broadcast %cst_21 : f32 to vector<2x256xf32>
    %44 = arith.maximumf %42, %43 : vector<2x256xf32>
    %45 = arith.negf %44 : vector<2x256xf32>
    %46 = math.exp %45 : vector<2x256xf32>
    %cst_22 = arith.constant 1.000000e+00 : f32
    %47 = vector.broadcast %cst_22 : f32 to vector<2x256xf32>
    %48 = arith.addf %47, %46 : vector<2x256xf32>
    %49 = arith.divf %47, %48 : vector<2x256xf32>
    %50 = vector.shape_cast %49 : vector<2x256xf32> to vector<2x1x256xf32>
    %51 = vector.broadcast %50 : vector<2x1x256xf32> to vector<2x32x256xf32>
    %52 = arith.mulf %34, %51 : vector<2x32x256xf32>
    %c0_23 = arith.constant 0 : index
    %c0_24 = arith.constant 0 : index
    %c0_25 = arith.constant 0 : index
    %53 = vector.load %arg7[%c0_23, %c0_24, %c0_25] : memref<2x32x256xf32, #tpu.memory_space<vmem>>, vector<2x32x256xf32>
    tpu.vector_store %arg7[%c0_23, %c0_24, %c0_25], %52 {strides = array<i32>} : memref<2x32x256xf32, #tpu.memory_space<vmem>>, vector<2x32x256xf32>,
    return
  }
  func.func @transform_0(%arg0: i32) -> (i32, i32, i32) {
    %c0_i32 = arith.constant 0 : i32
    %c0_i32_0 = arith.constant 0 : i32
    %c0_i32_1 = arith.constant 0 : i32
    return %arg0, %c0_i32, %c0_i32_0 : i32, i32, i32
  }
  func.func @transform_1(%arg0: i32) -> (i32, i32) {
    %c0_i32 = arith.constant 0 : i32
    %c0_i32_0 = arith.constant 0 : i32
    %c0_i32_1 = arith.constant 0 : i32
    return %c0_i32, %c0_i32_0 : i32, i32
  }
  func.func @transform_2(%arg0: i32) -> (i32, i32) {
    %c0_i32 = arith.constant 0 : i32
    %c0_i32_0 = arith.constant 0 : i32
    %c0_i32_1 = arith.constant 0 : i32
    return %c0_i32, %c0_i32_0 : i32, i32
  }
  func.func @transform_3(%arg0: i32) -> (i32, i32) {
    %c0_i32 = arith.constant 0 : i32
    %c0_i32_0 = arith.constant 0 : i32
    %c0_i32_1 = arith.constant 0 : i32
    return %c0_i32, %c0_i32_0 : i32, i32
  }
  func.func @transform_4(%arg0: i32) -> (i32, i32) {
    %c0_i32 = arith.constant 0 : i32
    %c0_i32_0 = arith.constant 0 : i32
    %c0_i32_1 = arith.constant 0 : i32
    return %c0_i32, %c0_i32_0 : i32, i32
  }
  func.func @transform_5(%arg0: i32) -> (i32, i32) {
    %c0_i32 = arith.constant 0 : i32
    %c0_i32_0 = arith.constant 0 : i32
    %c0_i32_1 = arith.constant 0 : i32
    return %c0_i32, %c0_i32_0 : i32, i32
  }
  func.func @transform_6(%arg0: i32) -> (i32, i32, i32) {
    %c0_i32 = arith.constant 0 : i32
    %c0_i32_0 = arith.constant 0 : i32
    %c0_i32_1 = arith.constant 0 : i32
    return %arg0, %c0_i32, %c0_i32_0 : i32, i32, i32
  }
}

</mosaic_0001>

<llo_original>
// kernel: _cbam_pallas.1
$region0: #{_cbam_pallas.1}
  #allocation0 [shape = 'u32[]', space=smem, size = 0x4, offset = 0x4, fixed_abs, tag = 'smem constant byte address 0x4 - core index']
  #allocation1 [shape = 'u32[72,128]{1,0:T(1,128)}', space=vmem, size = 0x9000, scoped, tag = 'internal scratch']
  %s0 = inlined_call_operand.hbm [shape: f32[2,32,256], index: 0, kind: input, shape index: {}]
  %s1 = inlined_call_operand.vmem [shape: f32[32,2], index: 1, kind: input, shape index: {}]
  %s2 = inlined_call_operand.vmem [shape: f32[1,2], index: 2, kind: input, shape index: {}]
  %s3 = inlined_call_operand.vmem [shape: f32[32,2], index: 3, kind: input, shape index: {}]
  %s4 = inlined_call_operand.vmem [shape: f32[32,1], index: 4, kind: input, shape index: {}]
  %s5 = inlined_call_operand.hbm [shape: bf16[512,256], index: 5, kind: input, shape index: {}]
  %s6 = inlined_call_operand.hbm [shape: f32[2,32,256], index: 6, kind: output, shape index: {}]
  %s7 = sld [smem:[#allocation0]]
  $region42: #{_cbam_pallas.1} parent=0
    _
  %s9 = ssub.s32 1, %s7
  %s10 = scalar_select 0, %s9, %s7
  $region1: #{_cbam_pallas.1} parent=0
    #allocation2 [shape = 'u8[65536]{0}', space=vmem, size = 0x10000, scoped, tag = 'input window, operand 0, single buffered']
    #allocation3 [shape = 's32[1]{0}', space=sflag, size = 0x4, scoped, tag = 'scoped memory for _cbam_pallas.1']
    #allocation4 [shape = 's32[1]{0}', space=sflag, size = 0x4, scoped, tag = 'scoped memory for _cbam_pallas.1']
    #allocation5 [shape = 'u8[262144]{0}', space=vmem, size = 0x40000, scoped, tag = 'input window, operand 5, single buffered']
    #allocation6 [shape = 's32[1]{0}', space=sflag, size = 0x4, scoped, tag = 'scoped memory for _cbam_pallas.1']
    #allocation7 [shape = 'u8[65536]{0}', space=vmem, size = 0x10000, scoped, tag = 'output window, operand 0, single buffered']
    %11 = vsyncpa [#allocation3], 0
    %12 = vsyncpa [#allocation6], 0
    %13 = vsyncpa [#allocation4], 0
    // Predicated region
    $region2: #{_cbam_pallas.1} parent=1 // pred_check
      _
    $region3: #{_cbam_pallas.1} parent=1 // pred_check_branch
      %15 = sbr.rel (0) target = $region5
    $region4: #{_cbam_pallas.1} parent=1 // pred_region
      %17 = vsyncadd [#allocation3], 0
      %s18 = sshll.u32 %s0, 4
      %s19 = int_to_ptr.hbm [resolvable:$true] %s18
      %s20 = sshll.u32 [#allocation2], 4
      %s21 = int_to_ptr.vmem [resolvable:$true] %s20
      %26 = dma.hbm_to_vmem [thread:$0]  %s19, 2048, %s21, [#allocation3], 256, 256, 16
    $region5: #{_cbam_pallas.1} parent=1 // pred_fallthru
      _
    // Predicated region
    $region6: #{_cbam_pallas.1} parent=1 // pred_check
      _
    $region7: #{_cbam_pallas.1} parent=1 // pred_check_branch
      %28 = sbr.rel (0) target = $region9
    $region8: #{_cbam_pallas.1} parent=1 // pred_region
      _
    $region9: #{_cbam_pallas.1} parent=1 // pred_fallthru
      _
    // Predicated region
    $region10: #{_cbam_pallas.1} parent=1 // pred_check
      _
    $region11: #{_cbam_pallas.1} parent=1 // pred_check_branch
      %30 = sbr.rel (0) target = $region13
    $region12: #{_cbam_pallas.1} parent=1 // pred_region
      _
    $region13: #{_cbam_pallas.1} parent=1 // pred_fallthru
      _
    // Predicated region
    $region14: #{_cbam_pallas.1} parent=1 // pred_check
      _
    $region15: #{_cbam_pallas.1} parent=1 // pred_check_branch
      %32 = sbr.rel (0) target = $region17
    $region16: #{_cbam_pallas.1} parent=1 // pred_region
      _
    $region17: #{_cbam_pallas.1} parent=1 // pred_fallthru
      _
    // Predicated region
    $region18: #{_cbam_pallas.1} parent=1 // pred_check
      _
    $region19: #{_cbam_pallas.1} parent=1 // pred_check_branch
      %34 = sbr.rel (0) target = $region21
    $region20: #{_cbam_pallas.1} parent=1 // pred_region
      _
    $region21: #{_cbam_pallas.1} parent=1 // pred_fallthru
      _
    // Predicated region
    $region22: #{_cbam_pallas.1} parent=1 // pred_check
      _
    $region23: #{_cbam_pallas.1} parent=1 // pred_check_branch
      %36 = sbr.rel (0) target = $region25
    $region24: #{_cbam_pallas.1} parent=1 // pred_region
      %38 = vsyncadd [#allocation6], 0
      %s39 = sshll.u32 %s5, 4
      %s40 = int_to_ptr.hbm [resolvable:$true] %s39
      %s41 = sshll.u32 [#allocation5], 4
      %s42 = int_to_ptr.vmem [resolvable:$true] %s41
      %47 = dma.hbm_to_vmem [thread:$0]  %s40, 8192, %s42, [#allocation6], 128, 128, 8
    $region25: #{_cbam_pallas.1} parent=1 // pred_fallthru
      _
    // Predicated region
    $region26: #{_cbam_pallas.1} parent=1 // pred_check
      _
    $region27: #{_cbam_pallas.1} parent=1 // pred_check_branch
      %49 = sbr.rel (0) target = $region29
    $region28: #{_cbam_pallas.1} parent=1 // pred_region
      %51 = dma.done [#allocation3], 2048
    $region29: #{_cbam_pallas.1} parent=1 // pred_fallthru
      _
    // Predicated region
    $region30: #{_cbam_pallas.1} parent=1 // pred_check
      _
    $region31: #{_cbam_pallas.1} parent=1 // pred_check_branch
      %53 = sbr.rel (0) target = $region33
    $region32: #{_cbam_pallas.1} parent=1 // pred_region
      %55 = dma.done [#allocation6], 8192
    $region33: #{_cbam_pallas.1} parent=1 // pred_fallthru
      _
    %v56 = vld [vmem:[#allocation2] sm:$0xff]
    %v57 = vld [vmem:[#allocation2 + $0x8] sm:$0xff]
    %v58 = vld [vmem:[#allocation2 + $0x10] sm:$0xff]
    %v59 = vld [vmem:[#allocation2 + $0x18] sm:$0xff]
    %v60 = vld [vmem:[#allocation2 + $0x20] sm:$0xff]
    %v61 = vld [vmem:[#allocation2 + $0x28] sm:$0xff]
    %v62 = vld [vmem:[#allocation2 + $0x30] sm:$0xff]
    %v63 = vld [vmem:[#allocation2 + $0x38] sm:$0xff]
    %v64 = vld [vmem:[#allocation2 + $0x40] sm:$0xff]
    %v65 = vld [vmem:[#allocation2 + $0x48] sm:$0xff]
    %v66 = vld [vmem:[#allocation2 + $0x50] sm:$0xff]
    %v67 = vld [vmem:[#allocation2 + $0x58] sm:$0xff]
    %v68 = vld [vmem:[#allocation2 + $0x60] sm:$0xff]
    %v69 = vld [vmem:[#allocation2 + $0x68] sm:$0xff]
    %v70 = vld [vmem:[#allocation2 + $0x70] sm:$0xff]
    %v71 = vld [vmem:[#allocation2 + $0x78] sm:$0xff]
    %v72 = vadd.f32 %v56, %v57
    %73 = vadd.xlane.f32.xlu0 %v72
    %v74 = vpop.xlane.xlu0 %73
    %v75 = vadd.f32 %v58, %v59
    %76 = vadd.xlane.f32.xlu0 %v75
    %v77 = vpop.xlane.xlu0 %76
    %v78 = vadd.f32 %v60, %v61
    %79 = vadd.xlane.f32.xlu0 %v78
    %v80 = vpop.xlane.xlu0 %79
    %v81 = vadd.f32 %v62, %v63
    %82 = vadd.xlane.f32.xlu0 %v81
    %v83 = vpop.xlane.xlu0 %82
    %v84 = vadd.f32 %v64, %v65
    %85 = vadd.xlane.f32.xlu0 %v84
    %v86 = vpop.xlane.xlu0 %85
    %v87 = vadd.f32 %v66, %v67
    %88 = vadd.xlane.f32.xlu0 %v87
    %v89 = vpop.xlane.xlu0 %88
    %v90 = vadd.f32 %v68, %v69
    %91 = vadd.xlane.f32.xlu0 %v90
    %v92 = vpop.xlane.xlu0 %91
    %v93 = vadd.f32 %v70, %v71
    %94 = vadd.xlane.f32.xlu0 %v93
    %v95 = vpop.xlane.xlu0 %94
    %v96 = vmul.f32 %v74, 0.00390625
    %v97 = vmul.f32 %v77, 0.00390625
    %v98 = vmul.f32 %v80, 0.00390625
    %v99 = vmul.f32 %v83, 0.00390625
    %v100 = vmul.f32 %v86, 0.00390625
    %v101 = vmul.f32 %v89, 0.00390625
    %v102 = vmul.f32 %v92, 0.00390625
    %v103 = vmul.f32 %v95, 0.00390625
    %v104 = vld [vmem:[%s1] sm:$0xff]
    %v105 = vld [vmem:[%s1 + $0x8] sm:$0xff]
    %v106 = vld [vmem:[%s1 + $0x10] sm:$0xff]
    %v107 = vld [vmem:[%s1 + $0x18] sm:$0xff]
    %v108 = vmul.f32 %v96, %v104
    %v109 = vmul.f32 %v97, %v105
    %v110 = vmul.f32 %v98, %v106
    %v111 = vmul.f32 %v99, %v107
    %v112 = vmul.f32 %v100, %v104
    %v113 = vmul.f32 %v101, %v105
    %v114 = vmul.f32 %v102, %v106
    %v115 = vmul.f32 %v103, %v107
    %vm116 = vcmask 15360
    %v117 = vsel %vm116, %v108, 0.0
    %v118 = vsel %vm116, %v109, 0.0
    %v119 = vadd.f32 %v117, %v118
    %v120 = vsel %vm116, %v110, 0.0
    %v121 = vadd.f32 %v119, %v120
    %v122 = vsel %vm116, %v111, 0.0
    %v123 = vadd.f32 %v121, %v122
    %v124 = vrot.slane %v123, 4
    %v125 = vadd.f32 %v123, %v124
    %v126 = vrot.slane %v125, 2
    %v127 = vadd.f32 %v125, %v126
    %v128 = vrot.slane %v127, 1
    %v129 = vadd.f32 %v127, %v128
    %v130 = vsel %vm116, %v112, 0.0
    %v131 = vsel %vm116, %v113, 0.0
    %v132 = vadd.f32 %v130, %v131
    %v133 = vsel %vm116, %v114, 0.0
    %v134 = vadd.f32 %v132, %v133
    %v135 = vsel %vm116, %v115, 0.0
    %v136 = vadd.f32 %v134, %v135
    %v137 = vrot.slane %v136, 4
    %v138 = vadd.f32 %v136, %v137
    %v139 = vrot.slane %v138, 2
    %v140 = vadd.f32 %v138, %v139
    %v141 = vrot.slane %v140, 1
    %v142 = vadd.f32 %v140, %v141
    %v143 = vld [vmem:[%s2] sm:$0x1]
    %v145 = vperm.slane %v143, 0
    %v147 = vadd.f32 %v129, %v145
    %v148 = vadd.f32 %v142, %v145
    %v149 = vmax.f32 %v147, 0.0
    %v150 = vmax.f32 %v148, 0.0
    %v151 = vld [vmem:[%s3] sm:$0xff]
    %v152 = vld [vmem:[%s3 + $0x8] sm:$0xff]
    %v153 = vld [vmem:[%s3 + $0x10] sm:$0xff]
    %v154 = vld [vmem:[%s3 + $0x18] sm:$0xff]
    %v155 = vperm.slane %v149, 0
    %v156 = vperm.slane %v150, 0
    %v157 = vmul.f32 %v151, %v155
    %v158 = vmul.f32 %v152, %v155
    %v159 = vmul.f32 %v153, %v155
    %v160 = vmul.f32 %v154, %v155
    %v161 = vmul.f32 %v151, %v156
    %v162 = vmul.f32 %v152, %v156
    %v163 = vmul.f32 %v153, %v156
    %v164 = vmul.f32 %v154, %v156
    %v165 = vsel %vm116, %v157, 0.0
    %166 = vadd.xlane.f32.xlu0 %v165
    %v167 = vpop.xlane.xlu0 %166
    %v168 = vsel %vm116, %v158, 0.0
    %169 = vadd.xlane.f32.xlu0 %v168
    %v170 = vpop.xlane.xlu0 %169
    %v171 = vsel %vm116, %v159, 0.0
    %172 = vadd.xlane.f32.xlu0 %v171
    %v173 = vpop.xlane.xlu0 %172
    %v174 = vsel %vm116, %v160, 0.0
    %175 = vadd.xlane.f32.xlu0 %v174
    %v176 = vpop.xlane.xlu0 %175
    %v177 = vsel %vm116, %v161, 0.0
    %178 = vadd.xlane.f32.xlu0 %v177
    %v179 = vpop.xlane.xlu0 %178
    %v180 = vsel %vm116, %v162, 0.0
    %181 = vadd.xlane.f32.xlu0 %v180
    %v182 = vpop.xlane.xlu0 %181
    %v183 = vsel %vm116, %v163, 0.0
    %184 = vadd.xlane.f32.xlu0 %v183
    %v185 = vpop.xlane.xlu0 %184
    %v186 = vsel %vm116, %v164, 0.0
    %187 = vadd.xlane.f32.xlu0 %v186
    %v188 = vpop.xlane.xlu0 %187
    %v189 = vld [vmem:[%s4] sm:$0xff]
    %v190 = vld [vmem:[%s4 + $0x8] sm:$0xff]
    %v191 = vld [vmem:[%s4 + $0x10] sm:$0xff]
    %v192 = vld [vmem:[%s4 + $0x18] sm:$0xff]
    %v193 = vadd.f32 %v167, %v189
    %v194 = vadd.f32 %v170, %v190
    %v195 = vadd.f32 %v173, %v191
    %v196 = vadd.f32 %v176, %v192
    %v197 = vadd.f32 %v179, %v189
    %v198 = vadd.f32 %v182, %v190
    %v199 = vadd.f32 %v185, %v191
    %v200 = vadd.f32 %v188, %v192
    %v201 = vxor.u32 %v193, 2147483648
    %v202 = vxor.u32 %v194, 2147483648
    %v203 = vxor.u32 %v195, 2147483648
    %v204 = vxor.u32 %v196, 2147483648
    %v205 = vxor.u32 %v197, 2147483648
    %v206 = vxor.u32 %v198, 2147483648
    %v207 = vxor.u32 %v199, 2147483648
    %v208 = vxor.u32 %v200, 2147483648
    %v209 = vmul.f32 %v201, 1.442695
    %v210 = vpow.pop %v209
    %v211 = vmul.f32 %v202, 1.442695
    %v212 = vpow.pop %v211
    %v213 = vmul.f32 %v203, 1.442695
    %v214 = vpow.pop %v213
    %v215 = vmul.f32 %v204, 1.442695
    %v216 = vpow.pop %v215
    %v217 = vmul.f32 %v205, 1.442695
    %v218 = vpow.pop %v217
    %v219 = vmul.f32 %v206, 1.442695
    %v220 = vpow.pop %v219
    %v221 = vmul.f32 %v207, 1.442695
    %v222 = vpow.pop %v221
    %v223 = vmul.f32 %v208, 1.442695
    %v224 = vpow.pop %v223
    %v225 = vadd.f32 %v210, 1.0
    %v226 = vadd.f32 %v212, 1.0
    %v227 = vadd.f32 %v214, 1.0
    %v228 = vadd.f32 %v216, 1.0
    %v229 = vadd.f32 %v218, 1.0
    %v230 = vadd.f32 %v220, 1.0
    %v231 = vadd.f32 %v222, 1.0
    %v232 = vadd.f32 %v224, 1.0
    %v233 = vrcp.pop %v225
    %v234 = vmul.f32 %v225, %v233
    %v235 = vsub.f32 1.0, %v234
    %v236 = vmul.f32 %v233, %v235
    %v237 = vadd.f32 %v233, %v236
    %vm238 = vweird.f32 %v225
    %vm239 = vweird.f32 %v233
    %vm240 = vmor %vm238, %vm239
    %v241 = vsel %vm240, %v233, %v237
    %v242 = vand.u32 2147483647, %v225
    %vm243 = vcmp.eq.f32.partialorder %v242, 8.507059e+37
    %v244 = vand.u32 %v225, 2147483648
    %v245 = vor.u32 1.1754944e-38, %v244
    %v246 = vsel %vm243, %v245, %v241
    %v247 = vmul.f32 1.0, %v246
    %v248 = vrcp.pop %v226
    %v249 = vmul.f32 %v226, %v248
    %v250 = vsub.f32 1.0, %v249
    %v251 = vmul.f32 %v248, %v250
    %v252 = vadd.f32 %v248, %v251
    %vm253 = vweird.f32 %v226
    %vm254 = vweird.f32 %v248
    %vm255 = vmor %vm253, %vm254
    %v256 = vsel %vm255, %v248, %v252
    %v257 = vand.u32 2147483647, %v226
    %vm258 = vcmp.eq.f32.partialorder %v257, 8.507059e+37
    %v259 = vand.u32 %v226, 2147483648
    %v260 = vor.u32 1.1754944e-38, %v259
    %v261 = vsel %vm258, %v260, %v256
    %v262 = vmul.f32 1.0, %v261
    %v263 = vrcp.pop %v227
    %v264 = vmul.f32 %v227, %v263
    %v265 = vsub.f32 1.0, %v264
    %v266 = vmul.f32 %v263, %v265
    %v267 = vadd.f32 %v263, %v266
    %vm268 = vweird.f32 %v227
    %vm269 = vweird.f32 %v263
    %vm270 = vmor %vm268, %vm269
    %v271 = vsel %vm270, %v263, %v267
    %v272 = vand.u32 2147483647, %v227
    %vm273 = vcmp.eq.f32.partialorder %v272, 8.507059e+37
    %v274 = vand.u32 %v227, 2147483648
    %v275 = vor.u32 1.1754944e-38, %v274
    %v276 = vsel %vm273, %v275, %v271
    %v277 = vmul.f32 1.0, %v276
    %v278 = vrcp.pop %v228
    %v279 = vmul.f32 %v228, %v278
    %v280 = vsub.f32 1.0, %v279
    %v281 = vmul.f32 %v278, %v280
    %v282 = vadd.f32 %v278, %v281
    %vm283 = vweird.f32 %v228
    %vm284 = vweird.f32 %v278
    %vm285 = vmor %vm283, %vm284
    %v286 = vsel %vm285, %v278, %v282
    %v287 = vand.u32 2147483647, %v228
    %vm288 = vcmp.eq.f32.partialorder %v287, 8.507059e+37
    %v289 = vand.u32 %v228, 2147483648
    %v290 = vor.u32 1.1754944e-38, %v289
    %v291 = vsel %vm288, %v290, %v286
    %v292 = vmul.f32 1.0, %v291
    %v293 = vrcp.pop %v229
    %v294 = vmul.f32 %v229, %v293
    %v295 = vsub.f32 1.0, %v294
    %v296 = vmul.f32 %v293, %v295
    %v297 = vadd.f32 %v293, %v296
    %vm298 = vweird.f32 %v229
    %vm299 = vweird.f32 %v293
    %vm300 = vmor %vm298, %vm299
    %v301 = vsel %vm300, %v293, %v297
    %v302 = vand.u32 2147483647, %v229
    %vm303 = vcmp.eq.f32.partialorder %v302, 8.507059e+37
    %v304 = vand.u32 %v229, 2147483648
    %v305 = vor.u32 1.1754944e-38, %v304
    %v306 = vsel %vm303, %v305, %v301
    %v307 = vmul.f32 1.0, %v306
    %v308 = vrcp.pop %v230
    %v309 = vmul.f32 %v230, %v308
    %v310 = vsub.f32 1.0, %v309
    %v311 = vmul.f32 %v308, %v310
    %v312 = vadd.f32 %v308, %v311
    %vm313 = vweird.f32 %v230
    %vm314 = vweird.f32 %v308
    %vm315 = vmor %vm313, %vm314
    %v316 = vsel %vm315, %v308, %v312
    %v317 = vand.u32 2147483647, %v230
    %vm318 = vcmp.eq.f32.partialorder %v317, 8.507059e+37
    %v319 = vand.u32 %v230, 2147483648
    %v320 = vor.u32 1.1754944e-38, %v319
    %v321 = vsel %vm318, %v320, %v316
    %v322 = vmul.f32 1.0, %v321
    %v323 = vrcp.pop %v231
    %v324 = vmul.f32 %v231, %v323
    %v325 = vsub.f32 1.0, %v324
    %v326 = vmul.f32 %v323, %v325
    %v327 = vadd.f32 %v323, %v326
    %vm328 = vweird.f32 %v231
    %vm329 = vweird.f32 %v323
    %vm330 = vmor %vm328, %vm329
    %v331 = vsel %vm330, %v323, %v327
    %v332 = vand.u32 2147483647, %v231
    %vm333 = vcmp.eq.f32.partialorder %v332, 8.507059e+37
    %v334 = vand.u32 %v231, 2147483648
    %v335 = vor.u32 1.1754944e-38, %v334
    %v336 = vsel %vm333, %v335, %v331
    %v337 = vmul.f32 1.0, %v336
    %v338 = vrcp.pop %v232
    %v339 = vmul.f32 %v232, %v338
    %v340 = vsub.f32 1.0, %v339
    %v341 = vmul.f32 %v338, %v340
    %v342 = vadd.f32 %v338, %v341
    %vm343 = vweird.f32 %v232
    %vm344 = vweird.f32 %v338
    %vm345 = vmor %vm343, %vm344
    %v346 = vsel %vm345, %v338, %v342
    %v347 = vand.u32 2147483647, %v232
    %vm348 = vcmp.eq.f32.partialorder %v347, 8.507059e+37
    %v349 = vand.u32 %v232, 2147483648
    %v350 = vor.u32 1.1754944e-38, %v349
    %v351 = vsel %vm348, %v350, %v346
    %v352 = vmul.f32 1.0, %v351
    %354 = vset.pattern.permute.xlu0 0
    %355 = vperm.xlu0 %354, %v247
    %v356 = vpop.permute.xlu0 %355
    %359 = vset.pattern.permute.xlu0 0
    %360 = vperm.xlu0 %359, %v262
    %v361 = vpop.permute.xlu0 %360
    %364 = vset.pattern.permute.xlu0 0
    %365 = vperm.xlu0 %364, %v277
    %v366 = vpop.permute.xlu0 %365
    %369 = vset.pattern.permute.xlu0 0
    %370 = vperm.xlu0 %369, %v292
    %v371 = vpop.permute.xlu0 %370
    %374 = vset.pattern.permute.xlu0 0
    %375 = vperm.xlu0 %374, %v307
    %v376 = vpop.permute.xlu0 %375
    %379 = vset.pattern.permute.xlu0 0
    %380 = vperm.xlu0 %379, %v322
    %v381 = vpop.permute.xlu0 %380
    %384 = vset.pattern.permute.xlu0 0
    %385 = vperm.xlu0 %384, %v337
    %v386 = vpop.permute.xlu0 %385
    %389 = vset.pattern.permute.xlu0 0
    %390 = vperm.xlu0 %389, %v352
    %v391 = vpop.permute.xlu0 %390
    %v393 = vmul.f32 %v56, %v356
    %v394 = vmul.f32 %v57, %v356
    %v395 = vmul.f32 %v58, %v361
    %v396 = vmul.f32 %v59, %v361
    %v397 = vmul.f32 %v60, %v366
    %v398 = vmul.f32 %v61, %v366
    %v399 = vmul.f32 %v62, %v371
    %v400 = vmul.f32 %v63, %v371
    %v401 = vmul.f32 %v64, %v376
    %v402 = vmul.f32 %v65, %v376
    %v403 = vmul.f32 %v66, %v381
    %v404 = vmul.f32 %v67, %v381
    %v405 = vmul.f32 %v68, %v386
    %v406 = vmul.f32 %v69, %v386
    %v407 = vmul.f32 %v70, %v391
    %v408 = vmul.f32 %v71, %v391
    %v409 = vmax.f32 %v393, %v395
    %v410 = vmax.f32 %v409, %v397
    %v411 = vmax.f32 %v410, %v399
    %v412 = vrot.slane %v411, 4
    %v413 = vmax.f32 %v411, %v412
    %v414 = vrot.slane %v413, 2
    %v415 = vmax.f32 %v413, %v414
    %v416 = vrot.slane %v415, 1
    %v417 = vmax.f32 %v415, %v416
    %v418 = vmax.f32 %v394, %v396
    %v419 = vmax.f32 %v418, %v398
    %v420 = vmax.f32 %v419, %v400
    %v421 = vrot.slane %v420, 4
    %v422 = vmax.f32 %v420, %v421
    %v423 = vrot.slane %v422, 2
    %v424 = vmax.f32 %v422, %v423
    %v425 = vrot.slane %v424, 1
    %v426 = vmax.f32 %v424, %v425
    %v427 = vmax.f32 %v401, %v403
    %v428 = vmax.f32 %v427, %v405
    %v429 = vmax.f32 %v428, %v407
    %v430 = vrot.slane %v429, 4
    %v431 = vmax.f32 %v429, %v430
    %v432 = vrot.slane %v431, 2
    %v433 = vmax.f32 %v431, %v432
    %v434 = vrot.slane %v433, 1
    %v435 = vmax.f32 %v433, %v434
    %v436 = vmax.f32 %v402, %v404
    %v437 = vmax.f32 %v436, %v406
    %v438 = vmax.f32 %v437, %v408
    %v439 = vrot.slane %v438, 4
    %v440 = vmax.f32 %v438, %v439
    %v441 = vrot.slane %v440, 2
    %v442 = vmax.f32 %v440, %v441
    %v443 = vrot.slane %v442, 1
    %v444 = vmax.f32 %v442, %v443
    %v445 = vadd.f32 %v393, %v395
    %v446 = vadd.f32 %v445, %v397
    %v447 = vadd.f32 %v446, %v399
    %v448 = vrot.slane %v447, 4
    %v449 = vadd.f32 %v447, %v448
    %v450 = vrot.slane %v449, 2
    %v451 = vadd.f32 %v449, %v450
    %v452 = vrot.slane %v451, 1
    %v453 = vadd.f32 %v451, %v452
    %v454 = vadd.f32 %v394, %v396
    %v455 = vadd.f32 %v454, %v398
    %v456 = vadd.f32 %v455, %v400
    %v457 = vrot.slane %v456, 4
    %v458 = vadd.f32 %v456, %v457
    %v459 = vrot.slane %v458, 2
    %v460 = vadd.f32 %v458, %v459
    %v461 = vrot.slane %v460, 1
    %v462 = vadd.f32 %v460, %v461
    %v463 = vadd.f32 %v401, %v403
    %v464 = vadd.f32 %v463, %v405
    %v465 = vadd.f32 %v464, %v407
    %v466 = vrot.slane %v465, 4
    %v467 = vadd.f32 %v465, %v466
    %v468 = vrot.slane %v467, 2
    %v469 = vadd.f32 %v467, %v468
    %v470 = vrot.slane %v469, 1
    %v471 = vadd.f32 %v469, %v470
    %v472 = vadd.f32 %v402, %v404
    %v473 = vadd.f32 %v472, %v406
    %v474 = vadd.f32 %v473, %v408
    %v475 = vrot.slane %v474, 4
    %v476 = vadd.f32 %v474, %v475
    %v477 = vrot.slane %v476, 2
    %v478 = vadd.f32 %v476, %v477
    %v479 = vrot.slane %v478, 1
    %v480 = vadd.f32 %v478, %v479
    %v481 = vmul.f32 %v453, 0.03125
    %v482 = vmul.f32 %v462, 0.03125
    %v483 = vmul.f32 %v471, 0.03125
    %v484 = vmul.f32 %v480, 0.03125
    %vm489 = vcmask 1041409
    %v490 = vsel %vm489, %v435, %v417
    %v491 = vsel %vm489, %v444, %v426
    %v498 = vsel %vm489, %v483, %v481
    %v499 = vsel %vm489, %v484, %v482
    %v502 = vpack.c.bf16 %v490, %v490
    %v503 = vpack.c.bf16 %v491, %v491
    %v504 = vpack.c.bf16 %v498, %v498
    %v505 = vpack.c.bf16 %v499, %v499
    %v506 = vld [vmem:[#allocation5] sm:$0xff]
    %v507 = vld [vmem:[#allocation5 + $0x8] sm:$0xff]
    %v508 = vld [vmem:[#allocation5 + $0x10] sm:$0xff]
    %v509 = vld [vmem:[#allocation5 + $0x18] sm:$0xff]
    %v510 = vld [vmem:[#allocation5 + $0x20] sm:$0xff]
    %v511 = vld [vmem:[#allocation5 + $0x28] sm:$0xff]
    %v512 = vld [vmem:[#allocation5 + $0x30] sm:$0xff]
    %v513 = vld [vmem:[#allocation5 + $0x38] sm:$0xff]
    %v514 = vld [vmem:[#allocation5 + $0x40] sm:$0xff]
    %v515 = vld [vmem:[#allocation5 + $0x48] sm:$0xff]
    %v516 = vld [vmem:[#allocation5 + $0x50] sm:$0xff]
    %v517 = vld [vmem:[#allocation5 + $0x58] sm:$0xff]
    %v518 = vld [vmem:[#allocation5 + $0x60] sm:$0xff]
    %v519 = vld [vmem:[#allocation5 + $0x68] sm:$0xff]
    %v520 = vld [vmem:[#allocation5 + $0x70] sm:$0xff]
    %v521 = vld [vmem:[#allocation5 + $0x78] sm:$0xff]
    %v522 = vld [vmem:[#allocation5 + $0x80] sm:$0xff]
    %v523 = vld [vmem:[#allocation5 + $0x88] sm:$0xff]
    %v524 = vld [vmem:[#allocation5 + $0x90] sm:$0xff]
    %v525 = vld [vmem:[#allocation5 + $0x98] sm:$0xff]
    %v526 = vld [vmem:[#allocation5 + $0xa0] sm:$0xff]
    %v527 = vld [vmem:[#allocation5 + $0xa8] sm:$0xff]
    %v528 = vld [vmem:[#allocation5 + $0xb0] sm:$0xff]
    %v529 = vld [vmem:[#allocation5 + $0xb8] sm:$0xff]
    %v530 = vld [vmem:[#allocation5 + $0xc0] sm:$0xff]
    %v531 = vld [vmem:[#allocation5 + $0xc8] sm:$0xff]
    %v532 = vld [vmem:[#allocation5 + $0xd0] sm:$0xff]
    %v533 = vld [vmem:[#allocation5 + $0xd8] sm:$0xff]
    %v534 = vld [vmem:[#allocation5 + $0xe0] sm:$0xff]
    %v535 = vld [vmem:[#allocation5 + $0xe8] sm:$0xff]
    %v536 = vld [vmem:[#allocation5 + $0xf0] sm:$0xff]
    %v537 = vld [vmem:[#allocation5 + $0xf8] sm:$0xff]
    %v538 = vld [vmem:[#allocation5 + $0x100] sm:$0xff]
    %v539 = vld [vmem:[#allocation5 + $0x108] sm:$0xff]
    %v540 = vld [vmem:[#allocation5 + $0x110] sm:$0xff]
    %v541 = vld [vmem:[#allocation5 + $0x118] sm:$0xff]
    %v542 = vld [vmem:[#allocation5 + $0x120] sm:$0xff]
    %v543 = vld [vmem:[#allocation5 + $0x128] sm:$0xff]
    %v544 = vld [vmem:[#allocation5 + $0x130] sm:$0xff]
    %v545 = vld [vmem:[#allocation5 + $0x138] sm:$0xff]
    %v546 = vld [vmem:[#allocation5 + $0x140] sm:$0xff]
    %v547 = vld [vmem:[#allocation5 + $0x148] sm:$0xff]
    %v548 = vld [vmem:[#allocation5 + $0x150] sm:$0xff]
    %v549 = vld [vmem:[#allocation5 + $0x158] sm:$0xff]
    %v550 = vld [vmem:[#allocation5 + $0x160] sm:$0xff]
    %v551 = vld [vmem:[#allocation5 + $0x168] sm:$0xff]
    %v552 = vld [vmem:[#allocation5 + $0x170] sm:$0xff]
    %v553 = vld [vmem:[#allocation5 + $0x178] sm:$0xff]
    %v554 = vld [vmem:[#allocation5 + $0x180] sm:$0xff]
    %v555 = vld [vmem:[#allocation5 + $0x188] sm:$0xff]
    %v556 = vld [vmem:[#allocation5 + $0x190] sm:$0xff]
    %v557 = vld [vmem:[#allocation5 + $0x198] sm:$0xff]
    %v558 = vld [vmem:[#allocation5 + $0x1a0] sm:$0xff]
    %v559 = vld [vmem:[#allocation5 + $0x1a8] sm:$0xff]
    %v560 = vld [vmem:[#allocation5 + $0x1b0] sm:$0xff]
    %v561 = vld [vmem:[#allocation5 + $0x1b8] sm:$0xff]
    %v562 = vld [vmem:[#allocation5 + $0x1c0] sm:$0xff]
    %v563 = vld [vmem:[#allocation5 + $0x1c8] sm:$0xff]
    %v564 = vld [vmem:[#allocation5 + $0x1d0] sm:$0xff]
    %v565 = vld [vmem:[#allocation5 + $0x1d8] sm:$0xff]
    %v566 = vld [vmem:[#allocation5 + $0x1e0] sm:$0xff]
    %v567 = vld [vmem:[#allocation5 + $0x1e8] sm:$0xff]
    %v568 = vld [vmem:[#allocation5 + $0x1f0] sm:$0xff]
    %v569 = vld [vmem:[#allocation5 + $0x1f8] sm:$0xff]
    %v634 = vunpack.c.l.b16 %v506
    %v635 = vunpack.c.h.b16 %v506
    %v636 = vunpack.c.l.b16 %v507
    %v637 = vunpack.c.h.b16 %v507
    %v638 = vunpack.c.l.b16 %v508
    %v639 = vunpack.c.h.b16 %v508
    %v640 = vunpack.c.l.b16 %v509
    %v641 = vunpack.c.h.b16 %v509
    %v642 = vunpack.c.l.b16 %v510
    %v643 = vunpack.c.h.b16 %v510
    %v644 = vunpack.c.l.b16 %v511
    %v645 = vunpack.c.h.b16 %v511
    %v646 = vunpack.c.l.b16 %v512
    %v647 = vunpack.c.h.b16 %v512
    %v648 = vunpack.c.l.b16 %v513
    %v649 = vunpack.c.h.b16 %v513
    %v650 = vunpack.c.l.b16 %v514
    %v651 = vunpack.c.h.b16 %v514
    %v652 = vunpack.c.l.b16 %v515
    %v653 = vunpack.c.h.b16 %v515
    %v654 = vunpack.c.l.b16 %v516
    %v655 = vunpack.c.h.b16 %v516
    %v656 = vunpack.c.l.b16 %v517
    %v657 = vunpack.c.h.b16 %v517
    %v658 = vunpack.c.l.b16 %v518
    %v659 = vunpack.c.h.b16 %v518
    %v660 = vunpack.c.l.b16 %v519
    %v661 = vunpack.c.h.b16 %v519
    %v662 = vunpack.c.l.b16 %v520
    %v663 = vunpack.c.h.b16 %v520
    %v664 = vunpack.c.l.b16 %v521
    %v665 = vunpack.c.h.b16 %v521
    %v666 = vunpack.c.l.b16 %v522
    %v667 = vunpack.c.h.b16 %v522
    %v668 = vunpack.c.l.b16 %v523
    %v669 = vunpack.c.h.b16 %v523
    %v670 = vunpack.c.l.b16 %v524
    %v671 = vunpack.c.h.b16 %v524
    %v672 = vunpack.c.l.b16 %v525
    %v673 = vunpack.c.h.b16 %v525
    %v674 = vunpack.c.l.b16 %v526
    %v675 = vunpack.c.h.b16 %v526
    %v676 = vunpack.c.l.b16 %v527
    %v677 = vunpack.c.h.b16 %v527
    %v678 = vunpack.c.l.b16 %v528
    %v679 = vunpack.c.h.b16 %v528
    %v680 = vunpack.c.l.b16 %v529
    %v681 = vunpack.c.h.b16 %v529
    %v682 = vunpack.c.l.b16 %v530
    %v683 = vunpack.c.h.b16 %v530
    %v684 = vunpack.c.l.b16 %v531
    %v685 = vunpack.c.h.b16 %v531
    %v686 = vunpack.c.l.b16 %v532
    %v687 = vunpack.c.h.b16 %v532
    %v688 = vunpack.c.l.b16 %v533
    %v689 = vunpack.c.h.b16 %v533
    %v690 = vunpack.c.l.b16 %v534
    %v691 = vunpack.c.h.b16 %v534
    %v692 = vunpack.c.l.b16 %v535
    %v693 = vunpack.c.h.b16 %v535
    %v694 = vunpack.c.l.b16 %v536
    %v695 = vunpack.c.h.b16 %v536
    %v696 = vunpack.c.l.b16 %v537
    %v697 = vunpack.c.h.b16 %v537
    %v698 = vunpack.c.l.b16 %v538
    %v699 = vunpack.c.h.b16 %v538
    %v700 = vunpack.c.l.b16 %v539
    %v701 = vunpack.c.h.b16 %v539
    %v702 = vunpack.c.l.b16 %v540
    %v703 = vunpack.c.h.b16 %v540
    %v704 = vunpack.c.l.b16 %v541
    %v705 = vunpack.c.h.b16 %v541
    %v706 = vunpack.c.l.b16 %v542
    %v707 = vunpack.c.h.b16 %v542
    %v708 = vunpack.c.l.b16 %v543
    %v709 = vunpack.c.h.b16 %v543
    %v710 = vunpack.c.l.b16 %v544
    %v711 = vunpack.c.h.b16 %v544
    %v712 = vunpack.c.l.b16 %v545
    %v713 = vunpack.c.h.b16 %v545
    %v714 = vunpack.c.l.b16 %v546
    %v715 = vunpack.c.h.b16 %v546
    %v716 = vunpack.c.l.b16 %v547
    %v717 = vunpack.c.h.b16 %v547
    %v718 = vunpack.c.l.b16 %v548
    %v719 = vunpack.c.h.b16 %v548
    %v720 = vunpack.c.l.b16 %v549
    %v721 = vunpack.c.h.b16 %v549
    %v722 = vunpack.c.l.b16 %v550
    %v723 = vunpack.c.h.b16 %v550
    %v724 = vunpack.c.l.b16 %v551
    %v725 = vunpack.c.h.b16 %v551
    %v726 = vunpack.c.l.b16 %v552
    %v727 = vunpack.c.h.b16 %v552
    %v728 = vunpack.c.l.b16 %v553
    %v729 = vunpack.c.h.b16 %v553
    %v730 = vunpack.c.l.b16 %v554
    %v731 = vunpack.c.h.b16 %v554
    %v732 = vunpack.c.l.b16 %v555
    %v733 = vunpack.c.h.b16 %v555
    %v734 = vunpack.c.l.b16 %v556
    %v735 = vunpack.c.h.b16 %v556
    %v736 = vunpack.c.l.b16 %v557
    %v737 = vunpack.c.h.b16 %v557
    %v738 = vunpack.c.l.b16 %v558
    %v739 = vunpack.c.h.b16 %v558
    %v740 = vunpack.c.l.b16 %v559
    %v741 = vunpack.c.h.b16 %v559
    %v742 = vunpack.c.l.b16 %v560
    %v743 = vunpack.c.h.b16 %v560
    %v744 = vunpack.c.l.b16 %v561
    %v745 = vunpack.c.h.b16 %v561
    %v746 = vunpack.c.l.b16 %v562
    %v747 = vunpack.c.h.b16 %v562
    %v748 = vunpack.c.l.b16 %v563
    %v749 = vunpack.c.h.b16 %v563
    %v750 = vunpack.c.l.b16 %v564
    %v751 = vunpack.c.h.b16 %v564
    %v752 = vunpack.c.l.b16 %v565
    %v753 = vunpack.c.h.b16 %v565
    %v754 = vunpack.c.l.b16 %v566
    %v755 = vunpack.c.h.b16 %v566
    %v756 = vunpack.c.l.b16 %v567
    %v757 = vunpack.c.h.b16 %v567
    %v758 = vunpack.c.l.b16 %v568
    %v759 = vunpack.c.h.b16 %v568
    %v760 = vunpack.c.l.b16 %v569
    %v761 = vunpack.c.h.b16 %v569
    %v762 = vpack.c.b16 %v636, %v634
    %v763 = vpack.c.b16 %v637, %v635
    %v764 = vpack.c.b16 %v640, %v638
    %v765 = vpack.c.b16 %v641, %v639
    %v766 = vpack.c.b16 %v644, %v642
    %v767 = vpack.c.b16 %v645, %v643
    %v768 = vpack.c.b16 %v648, %v646
    %v769 = vpack.c.b16 %v649, %v647
    %v770 = vpack.c.b16 %v652, %v650
    %v771 = vpack.c.b16 %v653, %v651
    %v772 = vpack.c.b16 %v656, %v654
    %v773 = vpack.c.b16 %v657, %v655
    %v774 = vpack.c.b16 %v660, %v658
    %v775 = vpack.c.b16 %v661, %v659
    %v776 = vpack.c.b16 %v664, %v662
    %v777 = vpack.c.b16 %v665, %v663
    %v778 = vpack.c.b16 %v668, %v666
    %v779 = vpack.c.b16 %v669, %v667
    %v780 = vpack.c.b16 %v672, %v670
    %v781 = vpack.c.b16 %v673, %v671
    %v782 = vpack.c.b16 %v676, %v674
    %v783 = vpack.c.b16 %v677, %v675
    %v784 = vpack.c.b16 %v680, %v678
    %v785 = vpack.c.b16 %v681, %v679
    %v786 = vpack.c.b16 %v684, %v682
    %v787 = vpack.c.b16 %v685, %v683
    %v788 = vpack.c.b16 %v688, %v686
    %v789 = vpack.c.b16 %v689, %v687
    %v790 = vpack.c.b16 %v692, %v690
    %v791 = vpack.c.b16 %v693, %v691
    %v792 = vpack.c.b16 %v696, %v694
    %v793 = vpack.c.b16 %v697, %v695
    %v794 = vpack.c.b16 %v700, %v698
    %v795 = vpack.c.b16 %v701, %v699
    %v796 = vpack.c.b16 %v704, %v702
    %v797 = vpack.c.b16 %v705, %v703
    %v798 = vpack.c.b16 %v708, %v706
    %v799 = vpack.c.b16 %v709, %v707
    %v800 = vpack.c.b16 %v712, %v710
    %v801 = vpack.c.b16 %v713, %v711
    %v802 = vpack.c.b16 %v716, %v714
    %v803 = vpack.c.b16 %v717, %v715
    %v804 = vpack.c.b16 %v720, %v718
    %v805 = vpack.c.b16 %v721, %v719
    %v806 = vpack.c.b16 %v724, %v722
    %v807 = vpack.c.b16 %v725, %v723
    %v808 = vpack.c.b16 %v728, %v726
    %v809 = vpack.c.b16 %v729, %v727
    %v810 = vpack.c.b16 %v732, %v730
    %v811 = vpack.c.b16 %v733, %v731
    %v812 = vpack.c.b16 %v736, %v734
    %v813 = vpack.c.b16 %v737, %v735
    %v814 = vpack.c.b16 %v740, %v738
    %v815 = vpack.c.b16 %v741, %v739
    %v816 = vpack.c.b16 %v744, %v742
    %v817 = vpack.c.b16 %v745, %v743
    %v818 = vpack.c.b16 %v748, %v746
    %v819 = vpack.c.b16 %v749, %v747
    %v820 = vpack.c.b16 %v752, %v750
    %v821 = vpack.c.b16 %v753, %v751
    %v822 = vpack.c.b16 %v756, %v754
    %v823 = vpack.c.b16 %v757, %v755
    %v824 = vpack.c.b16 %v760, %v758
    %v825 = vpack.c.b16 %v761, %v759
    %890 = vmatpush.bf16.msra.mxu0 %v776
    %891 = vmatpush.bf16.msra.mxu0 %v774
    %892 = vmatpush.bf16.msra.mxu0 %v772
    %893 = vmatpush.bf16.msra.mxu0 %v770
    %894 = vmatpush.bf16.msra.mxu0 %v768
    %895 = vmatpush.bf16.msra.mxu0 %v766
    %896 = vmatpush.bf16.msra.mxu0 %v764
    %897 = vmatpush.bf16.msra.mxu0 %v762
    %898 = vmatmul.bf16.gmra.mxu0 %v502
    %v899 = vpop.f32.mrf.mxu0
    %v900 = vadd.f32 0.0, %v899
    %v901 = vpop.f32.mrf.mxu0
    %902 = vdwg.mxu0
    %903 = vmatpush.bf16.msra.mxu0 %v792
    %904 = vmatpush.bf16.msra.mxu0 %v790
    %905 = vmatpush.bf16.msra.mxu0 %v788
    %906 = vmatpush.bf16.msra.mxu0 %v786
    %907 = vmatpush.bf16.msra.mxu0 %v784
    %908 = vmatpush.bf16.msra.mxu0 %v782
    %909 = vmatpush.bf16.msra.mxu0 %v780
    %910 = vmatpush.bf16.msra.mxu0 %v778
    %911 = vmatmul.bf16.gmra.mxu0 %v503
    %v912 = vpop.f32.mrf.mxu0
    %v913 = vadd.f32 %v900, %v912
    %v914 = vpop.f32.mrf.mxu0
    %915 = vdwg.mxu0
    %916 = vmatpush.bf16.msra.mxu0 %v808
    %917 = vmatpush.bf16.msra.mxu0 %v806
    %918 = vmatpush.bf16.msra.mxu0 %v804
    %919 = vmatpush.bf16.msra.mxu0 %v802
    %920 = vmatpush.bf16.msra.mxu0 %v800
    %921 = vmatpush.bf16.msra.mxu0 %v798
    %922 = vmatpush.bf16.msra.mxu0 %v796
    %923 = vmatpush.bf16.msra.mxu0 %v794
    %924 = vmatmul.bf16.gmra.mxu0 %v504
    %v925 = vpop.f32.mrf.mxu0
    %v926 = vadd.f32 %v913, %v925
    %v927 = vpop.f32.mrf.mxu0
    %928 = vdwg.mxu0
    %929 = vmatpush.bf16.msra.mxu0 %v824
    %930 = vmatpush.bf16.msra.mxu0 %v822
    %931 = vmatpush.bf16.msra.mxu0 %v820
    %932 = vmatpush.bf16.msra.mxu0 %v818
    %933 = vmatpush.bf16.msra.mxu0 %v816
    %934 = vmatpush.bf16.msra.mxu0 %v814
    %935 = vmatpush.bf16.msra.mxu0 %v812
    %936 = vmatpush.bf16.msra.mxu0 %v810
    %937 = vmatmul.bf16.gmra.mxu0 %v505
    %v938 = vpop.f32.mrf.mxu0
    %v939 = vadd.f32 %v926, %v938
    %v940 = vpop.f32.mrf.mxu0
    %941 = vdwg.mxu0
    %942 = vmatpush.bf16.msra.mxu0 %v777
    %943 = vmatpush.bf16.msra.mxu0 %v775
    %944 = vmatpush.bf16.msra.mxu0 %v773
    %945 = vmatpush.bf16.msra.mxu0 %v771
    %946 = vmatpush.bf16.msra.mxu0 %v769
    %947 = vmatpush.bf16.msra.mxu0 %v767
    %948 = vmatpush.bf16.msra.mxu0 %v765
    %949 = vmatpush.bf16.msra.mxu0 %v763
    %950 = vmatmul.bf16.gmra.mxu0 %v502
    %v951 = vpop.f32.mrf.mxu0
    %v952 = vadd.f32 0.0, %v951
    %v953 = vpop.f32.mrf.mxu0
    %954 = vdwg.mxu0
    %955 = vmatpush.bf16.msra.mxu0 %v793
    %956 = vmatpush.bf16.msra.mxu0 %v791
    %957 = vmatpush.bf16.msra.mxu0 %v789
    %958 = vmatpush.bf16.msra.mxu0 %v787
    %959 = vmatpush.bf16.msra.mxu0 %v785
    %960 = vmatpush.bf16.msra.mxu0 %v783
    %961 = vmatpush.bf16.msra.mxu0 %v781
    %962 = vmatpush.bf16.msra.mxu0 %v779
    %963 = vmatmul.bf16.gmra.mxu0 %v503
    %v964 = vpop.f32.mrf.mxu0
    %v965 = vadd.f32 %v952, %v964
    %v966 = vpop.f32.mrf.mxu0
    %967 = vdwg.mxu0
    %968 = vmatpush.bf16.msra.mxu0 %v809
    %969 = vmatpush.bf16.msra.mxu0 %v807
    %970 = vmatpush.bf16.msra.mxu0 %v805
    %971 = vmatpush.bf16.msra.mxu0 %v803
    %972 = vmatpush.bf16.msra.mxu0 %v801
    %973 = vmatpush.bf16.msra.mxu0 %v799
    %974 = vmatpush.bf16.msra.mxu0 %v797
    %975 = vmatpush.bf16.msra.mxu0 %v795
    %976 = vmatmul.bf16.gmra.mxu0 %v504
    %v977 = vpop.f32.mrf.mxu0
    %v978 = vadd.f32 %v965, %v977
    %v979 = vpop.f32.mrf.mxu0
    %980 = vdwg.mxu0
    %981 = vmatpush.bf16.msra.mxu0 %v825
    %982 = vmatpush.bf16.msra.mxu0 %v823
    %983 = vmatpush.bf16.msra.mxu0 %v821
    %984 = vmatpush.bf16.msra.mxu0 %v819
    %985 = vmatpush.bf16.msra.mxu0 %v817
    %986 = vmatpush.bf16.msra.mxu0 %v815
    %987 = vmatpush.bf16.msra.mxu0 %v813
    %988 = vmatpush.bf16.msra.mxu0 %v811
    %989 = vmatmul.bf16.gmra.mxu0 %v505
    %v990 = vpop.f32.mrf.mxu0
    %v991 = vadd.f32 %v978, %v990
    %v992 = vpop.f32.mrf.mxu0
    %993 = vdwg.mxu0
    %v994 = vmax.f32 %v939, 0.0
    %v995 = vmax.f32 %v991, 0.0
    %v996 = vxor.u32 %v994, 2147483648
    %v997 = vxor.u32 %v995, 2147483648
    %v998 = vmul.f32 %v996, 1.442695
    %v999 = vpow.pop %v998
    %v1000 = vmul.f32 %v997, 1.442695
    %v1001 = vpow.pop %v1000
    %v1002 = vadd.f32 %v999, 1.0
    %v1003 = vadd.f32 %v1001, 1.0
    %v1004 = vrcp.pop %v1002
    %v1005 = vmul.f32 %v1002, %v1004
    %v1006 = vsub.f32 1.0, %v1005
    %v1007 = vmul.f32 %v1004, %v1006
    %v1008 = vadd.f32 %v1004, %v1007
    %vm1009 = vweird.f32 %v1002
    %vm1010 = vweird.f32 %v1004
    %vm1011 = vmor %vm1009, %vm1010
    %v1012 = vsel %vm1011, %v1004, %v1008
    %v1013 = vand.u32 2147483647, %v1002
    %vm1014 = vcmp.eq.f32.partialorder %v1013, 8.507059e+37
    %v1015 = vand.u32 %v1002, 2147483648
    %v1016 = vor.u32 1.1754944e-38, %v1015
    %v1017 = vsel %vm1014, %v1016, %v1012
    %v1018 = vmul.f32 1.0, %v1017
    %v1019 = vrcp.pop %v1003
    %v1020 = vmul.f32 %v1003, %v1019
    %v1021 = vsub.f32 1.0, %v1020
    %v1022 = vmul.f32 %v1019, %v1021
    %v1023 = vadd.f32 %v1019, %v1022
    %vm1024 = vweird.f32 %v1003
    %vm1025 = vweird.f32 %v1019
    %vm1026 = vmor %vm1024, %vm1025
    %v1027 = vsel %vm1026, %v1019, %v1023
    %v1028 = vand.u32 2147483647, %v1003
    %vm1029 = vcmp.eq.f32.partialorder %v1028, 8.507059e+37
    %v1030 = vand.u32 %v1003, 2147483648
    %v1031 = vor.u32 1.1754944e-38, %v1030
    %v1032 = vsel %vm1029, %v1031, %v1027
    %v1033 = vmul.f32 1.0, %v1032
    %v1036 = vrot.slane %v1033, 7
    %vm1037 = vcmask 1040384
    %v1038 = vsel %vm1037, %v1018, %v1036
    %v1039 = vsel %vm489, %v1018, %v1036
    %v1040 = vrot.slane %v1039, 1
    %v1041 = vperm.slane %v1038, 0
    %v1042 = vperm.slane %v1038, 1
    %v1043 = vperm.slane %v1040, 0
    %v1044 = vperm.slane %v1040, 1
    %v1049 = vmul.f32 %v393, %v1041
    %v1050 = vmul.f32 %v394, %v1042
    %v1051 = vmul.f32 %v395, %v1041
    %v1052 = vmul.f32 %v396, %v1042
    %v1053 = vmul.f32 %v397, %v1041
    %v1054 = vmul.f32 %v398, %v1042
    %v1055 = vmul.f32 %v399, %v1041
    %v1056 = vmul.f32 %v400, %v1042
    %v1057 = vmul.f32 %v401, %v1043
    %v1058 = vmul.f32 %v402, %v1044
    %v1059 = vmul.f32 %v403, %v1043
    %v1060 = vmul.f32 %v404, %v1044
    %v1061 = vmul.f32 %v405, %v1043
    %v1062 = vmul.f32 %v406, %v1044
    %v1063 = vmul.f32 %v407, %v1043
    %v1064 = vmul.f32 %v408, %v1044
    %1065 = vst [vmem:[#allocation7] sm:$0xff] %v1049
    %1066 = vst [vmem:[#allocation7 + $0x8] sm:$0xff] %v1050
    %1067 = vst [vmem:[#allocation7 + $0x10] sm:$0xff] %v1051
    %1068 = vst [vmem:[#allocation7 + $0x18] sm:$0xff] %v1052
    %1069 = vst [vmem:[#allocation7 + $0x20] sm:$0xff] %v1053
    %1070 = vst [vmem:[#allocation7 + $0x28] sm:$0xff] %v1054
    %1071 = vst [vmem:[#allocation7 + $0x30] sm:$0xff] %v1055
    %1072 = vst [vmem:[#allocation7 + $0x38] sm:$0xff] %v1056
    %1073 = vst [vmem:[#allocation7 + $0x40] sm:$0xff] %v1057
    %1074 = vst [vmem:[#allocation7 + $0x48] sm:$0xff] %v1058
    %1075 = vst [vmem:[#allocation7 + $0x50] sm:$0xff] %v1059
    %1076 = vst [vmem:[#allocation7 + $0x58] sm:$0xff] %v1060
    %1077 = vst [vmem:[#allocation7 + $0x60] sm:$0xff] %v1061
    %1078 = vst [vmem:[#allocation7 + $0x68] sm:$0xff] %v1062
    %1079 = vst [vmem:[#allocation7 + $0x70] sm:$0xff] %v1063
    %1080 = vst [vmem:[#allocation7 + $0x78] sm:$0xff] %v1064
    // Predicated region
    $region34: #{_cbam_pallas.1} parent=1 // pred_check
      _
    $region35: #{_cbam_pallas.1} parent=1 // pred_check_branch
      %1082 = sbr.rel (0) target = $region37
    $region36: #{_cbam_pallas.1} parent=1 // pred_region
      %1084 = vsyncadd [#allocation4], 0
      %s1085 = sshll.u32 [#allocation7], 4
      %s1086 = int_to_ptr.vmem [resolvable:$true] %s1085
      %s1087 = sshll.u32 %s6, 4
      %s1088 = int_to_ptr.hbm [resolvable:$true] %s1087
      %1093 = dma.vmem_to_hbm [thread:$0]  %s1086, 2048, %s1088, [#allocation4], 256, 256, 16
    $region37: #{_cbam_pallas.1} parent=1 // pred_fallthru
      _
    // Predicated region
    $region38: #{_cbam_pallas.1} parent=1 // pred_check
      _
    $region39: #{_cbam_pallas.1} parent=1 // pred_check_branch
      %1095 = sbr.rel (0) target = $region41
    $region40: #{_cbam_pallas.1} parent=1 // pred_region
      %1097 = dma.done [#allocation4], 2048
    $region41: #{_cbam_pallas.1} parent=1 // pred_fallthru
      _
    %1098 = vsyncpa [#allocation3], 1
    %1099 = vsyncpa [#allocation6], 1
    %1100 = vsyncpa [#allocation4], 1

// kernel: _cbam_pallas.1
$region0: #{_cbam_pallas.1}
  #allocation0 [shape = 'u32[]', space=smem, size = 0x4, offset = 0x4, fixed_abs, tag = 'smem constant byte address 0x4 - core index']
  #allocation1 [shape = 'u32[72,128]{1,0:T(1,128)}', space=vmem, size = 0x9000, scoped, tag = 'internal scratch']
  %s0 = inlined_call_operand.hbm [shape: f32[2,32,256], index: 0, kind: input, shape index: {}]
  %s1 = inlined_call_operand.vmem [shape: f32[32,2], index: 1, kind: input, shape index: {}]
  %s2 = inlined_call_operand.vmem [shape: f32[1,2], index: 2, kind: input, shape index: {}]
  %s3 = inlined_call_operand.vmem [shape: f32[32,2], index: 3, kind: input, shape index: {}]
  %s4 = inlined_call_operand.vmem [shape: f32[32,1], index: 4, kind: input, shape index: {}]
  %s5 = inlined_call_operand.hbm [shape: bf16[512,256], index: 5, kind: input, shape index: {}]
  %s6 = inlined_call_operand.hbm [shape: f32[2,32,256], index: 6, kind: output, shape index: {}]
  %s7 = sld [smem:[#allocation0]]
  $region42: #{_cbam_pallas.1} parent=0
    _
  %s9 = ssub.s32 1, %s7
  %s10 = scalar_select 0, %s9, %s7
  $region1: #{_cbam_pallas.1} parent=0
    #allocation2 [shape = 'u8[65536]{0}', space=vmem, size = 0x10000, scoped, tag = 'input window, operand 0, single buffered']
    #allocation3 [shape = 's32[1]{0}', space=sflag, size = 0x4, scoped, tag = 'scoped memory for _cbam_pallas.1']
    #allocation4 [shape = 's32[1]{0}', space=sflag, size = 0x4, scoped, tag = 'scoped memory for _cbam_pallas.1']
    #allocation5 [shape = 'u8[262144]{0}', space=vmem, size = 0x40000, scoped, tag = 'input window, operand 5, single buffered']
    #allocation6 [shape = 's32[1]{0}', space=sflag, size = 0x4, scoped, tag = 'scoped memory for _cbam_pallas.1']
    #allocation7 [shape = 'u8[65536]{0}', space=vmem, size = 0x10000, scoped, tag = 'output window, operand 0, single buffered']
    %11 = vsyncpa [#allocation3], 0
    %12 = vsyncpa [#allocation6], 0
    %13 = vsyncpa [#allocation4], 0
    // Predicated region
    $region2: #{_cbam_pallas.1} parent=1 // pred_check
      _
    $region3: #{_cbam_pallas.1} parent=1 // pred_check_branch
      %15 = sbr.rel (0) target = $region5
    $region4: #{_cbam_pallas.1} parent=1 // pred_region
      %17 = vsyncadd [#allocation3], 0
      %s18 = sshll.u32 %s0, 4
      %s19 = int_to_ptr.hbm [resolvable:$true] %s18
      %s20 = sshll.u32 [#allocation2], 4
      %s21 = int_to_ptr.vmem [resolvable:$true] %s20
      %26 = dma.hbm_to_vmem [thread:$0]  %s19, 2048, %s21, [#allocation3], 256, 256, 16
    $region5: #{_cbam_pallas.1} parent=1 // pred_fallthru
      _
    // Predicated region
    $region6: #{_cbam_pallas.1} parent=1 // pred_check
      _
    $region7: #{_cbam_pallas.1} parent=1 // pred_check_branch
      %28 = sbr.rel (0) target = $region9
    $region8: #{_cbam_pallas.1} parent=1 // pred_region
      _
    $region9: #{_cbam_pallas.1} parent=1 // pred_fallthru
      _
    // Predicated region
    $region10: #{_cbam_pallas.1} parent=1 // pred_check
      _
    $region11: #{_cbam_pallas.1} parent=1 // pred_check_branch
      %30 = sbr.rel (0) target = $region13
    $region12: #{_cbam_pallas.1} parent=1 // pred_region
      _
    $region13: #{_cbam_pallas.1} parent=1 // pred_fallthru
      _
    // Predicated region
    $region14: #{_cbam_pallas.1} parent=1 // pred_check
      _
    $region15: #{_cbam_pallas.1} parent=1 // pred_check_branch
      %32 = sbr.rel (0) target = $region17
    $region16: #{_cbam_pallas.1} parent=1 // pred_region
      _
    $region17: #{_cbam_pallas.1} parent=1 // pred_fallthru
      _
    // Predicated region
    $region18: #{_cbam_pallas.1} parent=1 // pred_check
      _
    $region19: #{_cbam_pallas.1} parent=1 // pred_check_branch
      %34 = sbr.rel (0) target = $region21
    $region20: #{_cbam_pallas.1} parent=1 // pred_region
      _
    $region21: #{_cbam_pallas.1} parent=1 // pred_fallthru
      _
    // Predicated region
    $region22: #{_cbam_pallas.1} parent=1 // pred_check
      _
    $region23: #{_cbam_pallas.1} parent=1 // pred_check_branch
      %36 = sbr.rel (0) target = $region25
    $region24: #{_cbam_pallas.1} parent=1 // pred_region
      %38 = vsyncadd [#allocation6], 0
      %s39 = sshll.u32 %s5, 4
      %s40 = int_to_ptr.hbm [resolvable:$true] %s39
      %s41 = sshll.u32 [#allocation5], 4
      %s42 = int_to_ptr.vmem [resolvable:$true] %s41
      %47 = dma.hbm_to_vmem [thread:$0]  %s40, 8192, %s42, [#allocation6], 128, 128, 8
    $region25: #{_cbam_pallas.1} parent=1 // pred_fallthru
      _
    // Predicated region
    $region26: #{_cbam_pallas.1} parent=1 // pred_check
      _
    $region27: #{_cbam_pallas.1} parent=1 // pred_check_branch
      %49 = sbr.rel (0) target = $region29
    $region28: #{_cbam_pallas.1} parent=1 // pred_region
      %51 = dma.done [#allocation3], 2048
    $region29: #{_cbam_pallas.1} parent=1 // pred_fallthru
      _
    // Predicated region
    $region30: #{_cbam_pallas.1} parent=1 // pred_check
      _
    $region31: #{_cbam_pallas.1} parent=1 // pred_check_branch
      %53 = sbr.rel (0) target = $region33
    $region32: #{_cbam_pallas.1} parent=1 // pred_region
      %55 = dma.done [#allocation6], 8192
    $region33: #{_cbam_pallas.1} parent=1 // pred_fallthru
      _
    %v56 = vld [vmem:[#allocation2] sm:$0xff]
    %v57 = vld [vmem:[#allocation2 + $0x8] sm:$0xff]
    %v58 = vld [vmem:[#allocation2 + $0x10] sm:$0xff]
    %v59 = vld [vmem:[#allocation2 + $0x18] sm:$0xff]
    %v60 = vld [vmem:[#allocation2 + $0x20] sm:$0xff]
    %v61 = vld [vmem:[#allocation2 + $0x28] sm:$0xff]
    %v62 = vld [vmem:[#allocation2 + $0x30] sm:$0xff]
    %v63 = vld [vmem:[#allocation2 + $0x38] sm:$0xff]
    %v64 = vld [vmem:[#allocation2 + $0x40] sm:$0xff]
    %v65 = vld [vmem:[#allocation2 + $0x48] sm:$0xff]
    %v66 = vld [vmem:[#allocation2 + $0x50] sm:$0xff]
    %v67 = vld [vmem:[#allocation2 + $0x58] sm:$0xff]
    %v68 = vld [vmem:[#allocation2 + $0x60] sm:$0xff]
    %v69 = vld [vmem:[#allocation2 + $0x68] sm:$0xff]
    %v70 = vld [vmem:[#allocation2 + $0x70] sm:$0xff]
    %v71 = vld [vmem:[#allocation2 + $0x78] sm:$0xff]
    %v72 = vadd.f32 %v56, %v57
    %73 = vadd.xlane.f32.xlu0 %v72
    %v74 = vpop.xlane.xlu0 %73
    %v75 = vadd.f32 %v58, %v59
    %76 = vadd.xlane.f32.xlu0 %v75
    %v77 = vpop.xlane.xlu0 %76
    %v78 = vadd.f32 %v60, %v61
    %79 = vadd.xlane.f32.xlu0 %v78
    %v80 = vpop.xlane.xlu0 %79
    %v81 = vadd.f32 %v62, %v63
    %82 = vadd.xlane.f32.xlu0 %v81
    %v83 = vpop.xlane.xlu0 %82
    %v84 = vadd.f32 %v64, %v65
    %85 = vadd.xlane.f32.xlu0 %v84
    %v86 = vpop.xlane.xlu0 %85
    %v87 = vadd.f32 %v66, %v67
    %88 = vadd.xlane.f32.xlu0 %v87
    %v89 = vpop.xlane.xlu0 %88
    %v90 = vadd.f32 %v68, %v69
    %91 = vadd.xlane.f32.xlu0 %v90
    %v92 = vpop.xlane.xlu0 %91
    %v93 = vadd.f32 %v70, %v71
    %94 = vadd.xlane.f32.xlu0 %v93
    %v95 = vpop.xlane.xlu0 %94
    %v96 = vmul.f32 %v74, 0.00390625
    %v97 = vmul.f32 %v77, 0.00390625
    %v98 = vmul.f32 %v80, 0.00390625
    %v99 = vmul.f32 %v83, 0.00390625
    %v100 = vmul.f32 %v86, 0.00390625
    %v101 = vmul.f32 %v89, 0.00390625
    %v102 = vmul.f32 %v92, 0.00390625
    %v103 = vmul.f32 %v95, 0.00390625
    %v104 = vld [vmem:[%s1] sm:$0xff]
    %v105 = vld [vmem:[%s1 + $0x8] sm:$0xff]
    %v106 = vld [vmem:[%s1 + $0x10] sm:$0xff]
    %v107 = vld [vmem:[%s1 + $0x18] sm:$0xff]
    %v108 = vmul.f32 %v96, %v104
    %v109 = vmul.f32 %v97, %v105
    %v110 = vmul.f32 %v98, %v106
    %v111 = vmul.f32 %v99, %v107
    %v112 = vmul.f32 %v100, %v104
    %v113 = vmul.f32 %v101, %v105
    %v114 = vmul.f32 %v102, %v106
    %v115 = vmul.f32 %v103, %v107
    %vm116 = vcmask 15360
    %v117 = vsel %vm116, %v108, 0.0
    %v118 = vsel %vm116, %v109, 0.0
    %v119 = vadd.f32 %v117, %v118
    %v120 = vsel %vm116, %v110, 0.0
    %v121 = vadd.f32 %v119, %v120
    %v122 = vsel %vm116, %v111, 0.0
    %v123 = vadd.f32 %v121, %v122
    %v124 = vrot.slane %v123, 4
    %v125 = vadd.f32 %v123, %v124
    %v126 = vrot.slane %v125, 2
    %v127 = vadd.f32 %v125, %v126
    %v128 = vrot.slane %v127, 1
    %v129 = vadd.f32 %v127, %v128
    %v130 = vsel %vm116, %v112, 0.0
    %v131 = vsel %vm116, %v113, 0.0
    %v132 = vadd.f32 %v130, %v131
    %v133 = vsel %vm116, %v114, 0.0
    %v134 = vadd.f32 %v132, %v133
    %v135 = vsel %vm116, %v115, 0.0
    %v136 = vadd.f32 %v134, %v135
    %v137 = vrot.slane %v136, 4
    %v138 = vadd.f32 %v136, %v137
    %v139 = vrot.slane %v138, 2
    %v140 = vadd.f32 %v138, %v139
    %v141 = vrot.slane %v140, 1
    %v142 = vadd.f32 %v140, %v141
    %v143 = vld [vmem:[%s2] sm:$0x1]
    %v145 = vperm.slane %v143, 0
    %v147 = vadd.f32 %v129, %v145
    %v148 = vadd.f32 %v142, %v145
    %v149 = vmax.f32 %v147, 0.0
    %v150 = vmax.f32 %v148, 0.0
    %v151 = vld [vmem:[%s3] sm:$0xff]
    %v152 = vld [vmem:[%s3 + $0x8] sm:$0xff]
    %v153 = vld [vmem:[%s3 + $0x10] sm:$0xff]
    %v154 = vld [vmem:[%s3 + $0x18] sm:$0xff]
    %v155 = vperm.slane %v149, 0
    %v156 = vperm.slane %v150, 0
    %v157 = vmul.f32 %v151, %v155
    %v158 = vmul.f32 %v152, %v155
    %v159 = vmul.f32 %v153, %v155
    %v160 = vmul.f32 %v154, %v155
    %v161 = vmul.f32 %v151, %v156
    %v162 = vmul.f32 %v152, %v156
    %v163 = vmul.f32 %v153, %v156
    %v164 = vmul.f32 %v154, %v156
    %v165 = vsel %vm116, %v157, 0.0
    %166 = vadd.xlane.f32.xlu0 %v165
    %v167 = vpop.xlane.xlu0 %166
    %v168 = vsel %vm116, %v158, 0.0
    %169 = vadd.xlane.f32.xlu0 %v168
    %v170 = vpop.xlane.xlu0 %169
    %v171 = vsel %vm116, %v159, 0.0
    %172 = vadd.xlane.f32.xlu0 %v171
    %v173 = vpop.xlane.xlu0 %172
    %v174 = vsel %vm116, %v160, 0.0
    %175 = vadd.xlane.f32.xlu0 %v174
    %v176 = vpop.xlane.xlu0 %175
    %v177 = vsel %vm116, %v161, 0.0
    %178 = vadd.xlane.f32.xlu0 %v177
    %v179 = vpop.xlane.xlu0 %178
    %v180 = vsel %vm116, %v162, 0.0
    %181 = vadd.xlane.f32.xlu0 %v180
    %v182 = vpop.xlane.xlu0 %181
    %v183 = vsel %vm116, %v163, 0.0
    %184 = vadd.xlane.f32.xlu0 %v183
    %v185 = vpop.xlane.xlu0 %184
    %v186 = vsel %vm116, %v164, 0.0
    %187 = vadd.xlane.f32.xlu0 %v186
    %v188 = vpop.xlane.xlu0 %187
    %v189 = vld [vmem:[%s4] sm:$0xff]
    %v190 = vld [vmem:[%s4 + $0x8] sm:$0xff]
    %v191 = vld [vmem:[%s4 + $0x10] sm:$0xff]
    %v192 = vld [vmem:[%s4 + $0x18] sm:$0xff]
    %v193 = vadd.f32 %v167, %v189
    %v194 = vadd.f32 %v170, %v190
    %v195 = vadd.f32 %v173, %v191
    %v196 = vadd.f32 %v176, %v192
    %v197 = vadd.f32 %v179, %v189
    %v198 = vadd.f32 %v182, %v190
    %v199 = vadd.f32 %v185, %v191
    %v200 = vadd.f32 %v188, %v192
    %v201 = vxor.u32 %v193, 2147483648
    %v202 = vxor.u32 %v194, 2147483648
    %v203 = vxor.u32 %v195, 2147483648
    %v204 = vxor.u32 %v196, 2147483648
    %v205 = vxor.u32 %v197, 2147483648
    %v206 = vxor.u32 %v198, 2147483648
    %v207 = vxor.u32 %v199, 2147483648
    %v208 = vxor.u32 %v200, 2147483648
    %v209 = vmul.f32 %v201, 1.442695
    %v210 = vpow.pop %v209
    %v211 = vmul.f32 %v202, 1.442695
    %v212 = vpow.pop %v211
    %v213 = vmul.f32 %v203, 1.442695
    %v214 = vpow.pop %v213
    %v215 = vmul.f32 %v204, 1.442695
    %v216 = vpow.pop %v215
    %v217 = vmul.f32 %v205, 1.442695
    %v218 = vpow.pop %v217
    %v219 = vmul.f32 %v206, 1.442695
    %v220 = vpow.pop %v219
    %v221 = vmul.f32 %v207, 1.442695
    %v222 = vpow.pop %v221
    %v223 = vmul.f32 %v208, 1.442695
    %v224 = vpow.pop %v223
    %v225 = vadd.f32 %v210, 1.0
    %v226 = vadd.f32 %v212, 1.0
    %v227 = vadd.f32 %v214, 1.0
    %v228 = vadd.f32 %v216, 1.0
    %v229 = vadd.f32 %v218, 1.0
    %v230 = vadd.f32 %v220, 1.0
    %v231 = vadd.f32 %v222, 1.0
    %v232 = vadd.f32 %v224, 1.0
    %v233 = vrcp.pop %v225
    %v234 = vmul.f32 %v225, %v233
    %v235 = vsub.f32 1.0, %v234
    %v236 = vmul.f32 %v233, %v235
    %v237 = vadd.f32 %v233, %v236
    %vm238 = vweird.f32 %v225
    %vm239 = vweird.f32 %v233
    %vm240 = vmor %vm238, %vm239
    %v241 = vsel %vm240, %v233, %v237
    %v242 = vand.u32 2147483647, %v225
    %vm243 = vcmp.eq.f32.partialorder %v242, 8.507059e+37
    %v244 = vand.u32 %v225, 2147483648
    %v245 = vor.u32 1.1754944e-38, %v244
    %v246 = vsel %vm243, %v245, %v241
    %v247 = vmul.f32 1.0, %v246
    %v248 = vrcp.pop %v226
    %v249 = vmul.f32 %v226, %v248
    %v250 = vsub.f32 1.0, %v249
    %v251 = vmul.f32 %v248, %v250
    %v252 = vadd.f32 %v248, %v251
    %vm253 = vweird.f32 %v226
    %vm254 = vweird.f32 %v248
    %vm255 = vmor %vm253, %vm254
    %v256 = vsel %vm255, %v248, %v252
    %v257 = vand.u32 2147483647, %v226
    %vm258 = vcmp.eq.f32.partialorder %v257, 8.507059e+37
    %v259 = vand.u32 %v226, 2147483648
    %v260 = vor.u32 1.1754944e-38, %v259
    %v261 = vsel %vm258, %v260, %v256
    %v262 = vmul.f32 1.0, %v261
    %v263 = vrcp.pop %v227
    %v264 = vmul.f32 %v227, %v263
    %v265 = vsub.f32 1.0, %v264
    %v266 = vmul.f32 %v263, %v265
    %v267 = vadd.f32 %v263, %v266
    %vm268 = vweird.f32 %v227
    %vm269 = vweird.f32 %v263
    %vm270 = vmor %vm268, %vm269
    %v271 = vsel %vm270, %v263, %v267
    %v272 = vand.u32 2147483647, %v227
    %vm273 = vcmp.eq.f32.partialorder %v272, 8.507059e+37
    %v274 = vand.u32 %v227, 2147483648
    %v275 = vor.u32 1.1754944e-38, %v274
    %v276 = vsel %vm273, %v275, %v271
    %v277 = vmul.f32 1.0, %v276
    %v278 = vrcp.pop %v228
    %v279 = vmul.f32 %v228, %v278
    %v280 = vsub.f32 1.0, %v279
    %v281 = vmul.f32 %v278, %v280
    %v282 = vadd.f32 %v278, %v281
    %vm283 = vweird.f32 %v228
    %vm284 = vweird.f32 %v278
    %vm285 = vmor %vm283, %vm284
    %v286 = vsel %vm285, %v278, %v282
    %v287 = vand.u32 2147483647, %v228
    %vm288 = vcmp.eq.f32.partialorder %v287, 8.507059e+37
    %v289 = vand.u32 %v228, 2147483648
    %v290 = vor.u32 1.1754944e-38, %v289
    %v291 = vsel %vm288, %v290, %v286
    %v292 = vmul.f32 1.0, %v291
    %v293 = vrcp.pop %v229
    %v294 = vmul.f32 %v229, %v293
    %v295 = vsub.f32 1.0, %v294
    %v296 = vmul.f32 %v293, %v295
    %v297 = vadd.f32 %v293, %v296
    %vm298 = vweird.f32 %v229
    %vm299 = vweird.f32 %v293
    %vm300 = vmor %vm298, %vm299
    %v301 = vsel %vm300, %v293, %v297
    %v302 = vand.u32 2147483647, %v229
    %vm303 = vcmp.eq.f32.partialorder %v302, 8.507059e+37
    %v304 = vand.u32 %v229, 2147483648
    %v305 = vor.u32 1.1754944e-38, %v304
    %v306 = vsel %vm303, %v305, %v301
    %v307 = vmul.f32 1.0, %v306
    %v308 = vrcp.pop %v230
    %v309 = vmul.f32 %v230, %v308
    %v310 = vsub.f32 1.0, %v309
    %v311 = vmul.f32 %v308, %v310
    %v312 = vadd.f32 %v308, %v311
    %vm313 = vweird.f32 %v230
    %vm314 = vweird.f32 %v308
    %vm315 = vmor %vm313, %vm314
    %v316 = vsel %vm315, %v308, %v312
    %v317 = vand.u32 2147483647, %v230
    %vm318 = vcmp.eq.f32.partialorder %v317, 8.507059e+37
    %v319 = vand.u32 %v230, 2147483648
    %v320 = vor.u32 1.1754944e-38, %v319
    %v321 = vsel %vm318, %v320, %v316
    %v322 = vmul.f32 1.0, %v321
    %v323 = vrcp.pop %v231
    %v324 = vmul.f32 %v231, %v323
    %v325 = vsub.f32 1.0, %v324
    %v326 = vmul.f32 %v323, %v325
    %v327 = vadd.f32 %v323, %v326
    %vm328 = vweird.f32 %v231
    %vm329 = vweird.f32 %v323
    %vm330 = vmor %vm328, %vm329
    %v331 = vsel %vm330, %v323, %v327
    %v332 = vand.u32 2147483647, %v231
    %vm333 = vcmp.eq.f32.partialorder %v332, 8.507059e+37
    %v334 = vand.u32 %v231, 2147483648
    %v335 = vor.u32 1.1754944e-38, %v334
    %v336 = vsel %vm333, %v335, %v331
    %v337 = vmul.f32 1.0, %v336
    %v338 = vrcp.pop %v232
    %v339 = vmul.f32 %v232, %v338
    %v340 = vsub.f32 1.0, %v339
    %v341 = vmul.f32 %v338, %v340
    %v342 = vadd.f32 %v338, %v341
    %vm343 = vweird.f32 %v232
    %vm344 = vweird.f32 %v338
    %vm345 = vmor %vm343, %vm344
    %v346 = vsel %vm345, %v338, %v342
    %v347 = vand.u32 2147483647, %v232
    %vm348 = vcmp.eq.f32.partialorder %v347, 8.507059e+37
    %v349 = vand.u32 %v232, 2147483648
    %v350 = vor.u32 1.1754944e-38, %v349
    %v351 = vsel %vm348, %v350, %v346
    %v352 = vmul.f32 1.0, %v351
    %354 = vset.pattern.permute.xlu0 0
    %355 = vperm.xlu0 %354, %v247
    %v356 = vpop.permute.xlu0 %355
    %359 = vset.pattern.permute.xlu0 0
    %360 = vperm.xlu0 %359, %v262
    %v361 = vpop.permute.xlu0 %360
    %364 = vset.pattern.permute.xlu0 0
    %365 = vperm.xlu0 %364, %v277
    %v366 = vpop.permute.xlu0 %365
    %369 = vset.pattern.permute.xlu0 0
    %370 = vperm.xlu0 %369, %v292
    %v371 = vpop.permute.xlu0 %370
    %374 = vset.pattern.permute.xlu0 0
    %375 = vperm.xlu0 %374, %v307
    %v376 = vpop.permute.xlu0 %375
    %379 = vset.pattern.permute.xlu0 0
    %380 = vperm.xlu0 %379, %v322
    %v381 = vpop.permute.xlu0 %380
    %384 = vset.pattern.permute.xlu0 0
    %385 = vperm.xlu0 %384, %v337
    %v386 = vpop.permute.xlu0 %385
    %389 = vset.pattern.permute.xlu0 0
    %390 = vperm.xlu0 %389, %v352
    %v391 = vpop.permute.xlu0 %390
    %v393 = vmul.f32 %v56, %v356
    %v394 = vmul.f32 %v57, %v356
    %v395 = vmul.f32 %v58, %v361
    %v396 = vmul.f32 %v59, %v361
    %v397 = vmul.f32 %v60, %v366
    %v398 = vmul.f32 %v61, %v366
    %v399 = vmul.f32 %v62, %v371
    %v400 = vmul.f32 %v63, %v371
    %v401 = vmul.f32 %v64, %v376
    %v402 = vmul.f32 %v65, %v376
    %v403 = vmul.f32 %v66, %v381
    %v404 = vmul.f32 %v67, %v381
    %v405 = vmul.f32 %v68, %v386
    %v406 = vmul.f32 %v69, %v386
    %v407 = vmul.f32 %v70, %v391
    %v408 = vmul.f32 %v71, %v391
    %v409 = vmax.f32 %v393, %v395
    %v410 = vmax.f32 %v409, %v397
    %v411 = vmax.f32 %v410, %v399
    %v412 = vrot.slane %v411, 4
    %v413 = vmax.f32 %v411, %v412
    %v414 = vrot.slane %v413, 2
    %v415 = vmax.f32 %v413, %v414
    %v416 = vrot.slane %v415, 1
    %v417 = vmax.f32 %v415, %v416
    %v418 = vmax.f32 %v394, %v396
    %v419 = vmax.f32 %v418, %v398
    %v420 = vmax.f32 %v419, %v400
    %v421 = vrot.slane %v420, 4
    %v422 = vmax.f32 %v420, %v421
    %v423 = vrot.slane %v422, 2
    %v424 = vmax.f32 %v422, %v423
    %v425 = vrot.slane %v424, 1
    %v426 = vmax.f32 %v424, %v425
    %v427 = vmax.f32 %v401, %v403
    %v428 = vmax.f32 %v427, %v405
    %v429 = vmax.f32 %v428, %v407
    %v430 = vrot.slane %v429, 4
    %v431 = vmax.f32 %v429, %v430
    %v432 = vrot.slane %v431, 2
    %v433 = vmax.f32 %v431, %v432
    %v434 = vrot.slane %v433, 1
    %v435 = vmax.f32 %v433, %v434
    %v436 = vmax.f32 %v402, %v404
    %v437 = vmax.f32 %v436, %v406
    %v438 = vmax.f32 %v437, %v408
    %v439 = vrot.slane %v438, 4
    %v440 = vmax.f32 %v438, %v439
    %v441 = vrot.slane %v440, 2
    %v442 = vmax.f32 %v440, %v441
    %v443 = vrot.slane %v442, 1
    %v444 = vmax.f32 %v442, %v443
    %v445 = vadd.f32 %v393, %v395
    %v446 = vadd.f32 %v445, %v397
    %v447 = vadd.f32 %v446, %v399
    %v448 = vrot.slane %v447, 4
    %v449 = vadd.f32 %v447, %v448
    %v450 = vrot.slane %v449, 2
    %v451 = vadd.f32 %v449, %v450
    %v452 = vrot.slane %v451, 1
    %v453 = vadd.f32 %v451, %v452
    %v454 = vadd.f32 %v394, %v396
    %v455 = vadd.f32 %v454, %v398
    %v456 = vadd.f32 %v455, %v400
    %v457 = vrot.slane %v456, 4
    %v458 = vadd.f32 %v456, %v457
    %v459 = vrot.slane %v458, 2
    %v460 = vadd.f32 %v458, %v459
    %v461 = vrot.slane %v460, 1
    %v462 = vadd.f32 %v460, %v461
    %v463 = vadd.f32 %v401, %v403
    %v464 = vadd.f32 %v463, %v405
    %v465 = vadd.f32 %v464, %v407
    %v466 = vrot.slane %v465, 4
    %v467 = vadd.f32 %v465, %v466
    %v468 = vrot.slane %v467, 2
    %v469 = vadd.f32 %v467, %v468
    %v470 = vrot.slane %v469, 1
    %v471 = vadd.f32 %v469, %v470
    %v472 = vadd.f32 %v402, %v404
    %v473 = vadd.f32 %v472, %v406
    %v474 = vadd.f32 %v473, %v408
    %v475 = vrot.slane %v474, 4
    %v476 = vadd.f32 %v474, %v475
    %v477 = vrot.slane %v476, 2
    %v478 = vadd.f32 %v476, %v477
    %v479 = vrot.slane %v478, 1
    %v480 = vadd.f32 %v478, %v479
    %v481 = vmul.f32 %v453, 0.03125
    %v482 = vmul.f32 %v462, 0.03125
    %v483 = vmul.f32 %v471, 0.03125
    %v484 = vmul.f32 %v480, 0.03125
    %vm489 = vcmask 1041409
    %v490 = vsel %vm489, %v435, %v417
    %v491 = vsel %vm489, %v444, %v426
    %v498 = vsel %vm489, %v483, %v481
    %v499 = vsel %vm489, %v484, %v482
    %v502 = vpack.c.bf16 %v490, %v490
    %v503 = vpack.c.bf16 %v491, %v491
    %v504 = vpack.c.bf16 %v498, %v498
    %v505 = vpack.c.bf16 %v499, %v499
    %v506 = vld [vmem:[#allocation5] sm:$0xff]
    %v507 = vld [vmem:[#allocation5 + $0x8] sm:$0xff]
    %v508 = vld [vmem:[#allocation5 + $0x10] sm:$0xff]
    %v509 = vld [vmem:[#allocation5 + $0x18] sm:$0xff]
    %v510 = vld [vmem:[#allocation5 + $0x20] sm:$0xff]
    %v511 = vld [vmem:[#allocation5 + $0x28] sm:$0xff]
    %v512 = vld [vmem:[#allocation5 + $0x30] sm:$0xff]
    %v513 = vld [vmem:[#allocation5 + $0x38] sm:$0xff]
    %v514 = vld [vmem:[#allocation5 + $0x40] sm:$0xff]
    %v515 = vld [vmem:[#allocation5 + $0x48] sm:$0xff]
    %v516 = vld [vmem:[#allocation5 + $0x50] sm:$0xff]
    %v517 = vld [vmem:[#allocation5 + $0x58] sm:$0xff]
    %v518 = vld [vmem:[#allocation5 + $0x60] sm:$0xff]
    %v519 = vld [vmem:[#allocation5 + $0x68] sm:$0xff]
    %v520 = vld [vmem:[#allocation5 + $0x70] sm:$0xff]
    %v521 = vld [vmem:[#allocation5 + $0x78] sm:$0xff]
    %v522 = vld [vmem:[#allocation5 + $0x80] sm:$0xff]
    %v523 = vld [vmem:[#allocation5 + $0x88] sm:$0xff]
    %v524 = vld [vmem:[#allocation5 + $0x90] sm:$0xff]
    %v525 = vld [vmem:[#allocation5 + $0x98] sm:$0xff]
    %v526 = vld [vmem:[#allocation5 + $0xa0] sm:$0xff]
    %v527 = vld [vmem:[#allocation5 + $0xa8] sm:$0xff]
    %v528 = vld [vmem:[#allocation5 + $0xb0] sm:$0xff]
    %v529 = vld [vmem:[#allocation5 + $0xb8] sm:$0xff]
    %v530 = vld [vmem:[#allocation5 + $0xc0] sm:$0xff]
    %v531 = vld [vmem:[#allocation5 + $0xc8] sm:$0xff]
    %v532 = vld [vmem:[#allocation5 + $0xd0] sm:$0xff]
    %v533 = vld [vmem:[#allocation5 + $0xd8] sm:$0xff]
    %v534 = vld [vmem:[#allocation5 + $0xe0] sm:$0xff]
    %v535 = vld [vmem:[#allocation5 + $0xe8] sm:$0xff]
    %v536 = vld [vmem:[#allocation5 + $0xf0] sm:$0xff]
    %v537 = vld [vmem:[#allocation5 + $0xf8] sm:$0xff]
    %v538 = vld [vmem:[#allocation5 + $0x100] sm:$0xff]
    %v539 = vld [vmem:[#allocation5 + $0x108] sm:$0xff]
    %v540 = vld [vmem:[#allocation5 + $0x110] sm:$0xff]
    %v541 = vld [vmem:[#allocation5 + $0x118] sm:$0xff]
    %v542 = vld [vmem:[#allocation5 + $0x120] sm:$0xff]
    %v543 = vld [vmem:[#allocation5 + $0x128] sm:$0xff]
    %v544 = vld [vmem:[#allocation5 + $0x130] sm:$0xff]
    %v545 = vld [vmem:[#allocation5 + $0x138] sm:$0xff]
    %v546 = vld [vmem:[#allocation5 + $0x140] sm:$0xff]
    %v547 = vld [vmem:[#allocation5 + $0x148] sm:$0xff]
    %v548 = vld [vmem:[#allocation5 + $0x150] sm:$0xff]
    %v549 = vld [vmem:[#allocation5 + $0x158] sm:$0xff]
    %v550 = vld [vmem:[#allocation5 + $0x160] sm:$0xff]
    %v551 = vld [vmem:[#allocation5 + $0x168] sm:$0xff]
    %v552 = vld [vmem:[#allocation5 + $0x170] sm:$0xff]
    %v553 = vld [vmem:[#allocation5 + $0x178] sm:$0xff]
    %v554 = vld [vmem:[#allocation5 + $0x180] sm:$0xff]
    %v555 = vld [vmem:[#allocation5 + $0x188] sm:$0xff]
    %v556 = vld [vmem:[#allocation5 + $0x190] sm:$0xff]
    %v557 = vld [vmem:[#allocation5 + $0x198] sm:$0xff]
    %v558 = vld [vmem:[#allocation5 + $0x1a0] sm:$0xff]
    %v559 = vld [vmem:[#allocation5 + $0x1a8] sm:$0xff]
    %v560 = vld [vmem:[#allocation5 + $0x1b0] sm:$0xff]
    %v561 = vld [vmem:[#allocation5 + $0x1b8] sm:$0xff]
    %v562 = vld [vmem:[#allocation5 + $0x1c0] sm:$0xff]
    %v563 = vld [vmem:[#allocation5 + $0x1c8] sm:$0xff]
    %v564 = vld [vmem:[#allocation5 + $0x1d0] sm:$0xff]
    %v565 = vld [vmem:[#allocation5 + $0x1d8] sm:$0xff]
    %v566 = vld [vmem:[#allocation5 + $0x1e0] sm:$0xff]
    %v567 = vld [vmem:[#allocation5 + $0x1e8] sm:$0xff]
    %v568 = vld [vmem:[#allocation5 + $0x1f0] sm:$0xff]
    %v569 = vld [vmem:[#allocation5 + $0x1f8] sm:$0xff]
    %v634 = vunpack.c.l.b16 %v506
    %v635 = vunpack.c.h.b16 %v506
    %v636 = vunpack.c.l.b16 %v507
    %v637 = vunpack.c.h.b16 %v507
    %v638 = vunpack.c.l.b16 %v508
    %v639 = vunpack.c.h.b16 %v508
    %v640 = vunpack.c.l.b16 %v509
    %v641 = vunpack.c.h.b16 %v509
    %v642 = vunpack.c.l.b16 %v510
    %v643 = vunpack.c.h.b16 %v510
    %v644 = vunpack.c.l.b16 %v511
    %v645 = vunpack.c.h.b16 %v511
    %v646 = vunpack.c.l.b16 %v512
    %v647 = vunpack.c.h.b16 %v512
    %v648 = vunpack.c.l.b16 %v513
    %v649 = vunpack.c.h.b16 %v513
    %v650 = vunpack.c.l.b16 %v514
    %v651 = vunpack.c.h.b16 %v514
    %v652 = vunpack.c.l.b16 %v515
    %v653 = vunpack.c.h.b16 %v515
    %v654 = vunpack.c.l.b16 %v516
    %v655 = vunpack.c.h.b16 %v516
    %v656 = vunpack.c.l.b16 %v517
    %v657 = vunpack.c.h.b16 %v517
    %v658 = vunpack.c.l.b16 %v518
    %v659 = vunpack.c.h.b16 %v518
    %v660 = vunpack.c.l.b16 %v519
    %v661 = vunpack.c.h.b16 %v519
    %v662 = vunpack.c.l.b16 %v520
    %v663 = vunpack.c.h.b16 %v520
    %v664 = vunpack.c.l.b16 %v521
    %v665 = vunpack.c.h.b16 %v521
    %v666 = vunpack.c.l.b16 %v522
    %v667 = vunpack.c.h.b16 %v522
    %v668 = vunpack.c.l.b16 %v523
    %v669 = vunpack.c.h.b16 %v523
    %v670 = vunpack.c.l.b16 %v524
    %v671 = vunpack.c.h.b16 %v524
    %v672 = vunpack.c.l.b16 %v525
    %v673 = vunpack.c.h.b16 %v525
    %v674 = vunpack.c.l.b16 %v526
    %v675 = vunpack.c.h.b16 %v526
    %v676 = vunpack.c.l.b16 %v527
    %v677 = vunpack.c.h.b16 %v527
    %v678 = vunpack.c.l.b16 %v528
    %v679 = vunpack.c.h.b16 %v528
    %v680 = vunpack.c.l.b16 %v529
    %v681 = vunpack.c.h.b16 %v529
    %v682 = vunpack.c.l.b16 %v530
    %v683 = vunpack.c.h.b16 %v530
    %v684 = vunpack.c.l.b16 %v531
    %v685 = vunpack.c.h.b16 %v531
    %v686 = vunpack.c.l.b16 %v532
    %v687 = vunpack.c.h.b16 %v532
    %v688 = vunpack.c.l.b16 %v533
    %v689 = vunpack.c.h.b16 %v533
    %v690 = vunpack.c.l.b16 %v534
    %v691 = vunpack.c.h.b16 %v534
    %v692 = vunpack.c.l.b16 %v535
    %v693 = vunpack.c.h.b16 %v535
    %v694 = vunpack.c.l.b16 %v536
    %v695 = vunpack.c.h.b16 %v536
    %v696 = vunpack.c.l.b16 %v537
    %v697 = vunpack.c.h.b16 %v537
    %v698 = vunpack.c.l.b16 %v538
    %v699 = vunpack.c.h.b16 %v538
    %v700 = vunpack.c.l.b16 %v539
    %v701 = vunpack.c.h.b16 %v539
    %v702 = vunpack.c.l.b16 %v540
    %v703 = vunpack.c.h.b16 %v540
    %v704 = vunpack.c.l.b16 %v541
    %v705 = vunpack.c.h.b16 %v541
    %v706 = vunpack.c.l.b16 %v542
    %v707 = vunpack.c.h.b16 %v542
    %v708 = vunpack.c.l.b16 %v543
    %v709 = vunpack.c.h.b16 %v543
    %v710 = vunpack.c.l.b16 %v544
    %v711 = vunpack.c.h.b16 %v544
    %v712 = vunpack.c.l.b16 %v545
    %v713 = vunpack.c.h.b16 %v545
    %v714 = vunpack.c.l.b16 %v546
    %v715 = vunpack.c.h.b16 %v546
    %v716 = vunpack.c.l.b16 %v547
    %v717 = vunpack.c.h.b16 %v547
    %v718 = vunpack.c.l.b16 %v548
    %v719 = vunpack.c.h.b16 %v548
    %v720 = vunpack.c.l.b16 %v549
    %v721 = vunpack.c.h.b16 %v549
    %v722 = vunpack.c.l.b16 %v550
    %v723 = vunpack.c.h.b16 %v550
    %v724 = vunpack.c.l.b16 %v551
    %v725 = vunpack.c.h.b16 %v551
    %v726 = vunpack.c.l.b16 %v552
    %v727 = vunpack.c.h.b16 %v552
    %v728 = vunpack.c.l.b16 %v553
    %v729 = vunpack.c.h.b16 %v553
    %v730 = vunpack.c.l.b16 %v554
    %v731 = vunpack.c.h.b16 %v554
    %v732 = vunpack.c.l.b16 %v555
    %v733 = vunpack.c.h.b16 %v555
    %v734 = vunpack.c.l.b16 %v556
    %v735 = vunpack.c.h.b16 %v556
    %v736 = vunpack.c.l.b16 %v557
    %v737 = vunpack.c.h.b16 %v557
    %v738 = vunpack.c.l.b16 %v558
    %v739 = vunpack.c.h.b16 %v558
    %v740 = vunpack.c.l.b16 %v559
    %v741 = vunpack.c.h.b16 %v559
    %v742 = vunpack.c.l.b16 %v560
    %v743 = vunpack.c.h.b16 %v560
    %v744 = vunpack.c.l.b16 %v561
    %v745 = vunpack.c.h.b16 %v561
    %v746 = vunpack.c.l.b16 %v562
    %v747 = vunpack.c.h.b16 %v562
    %v748 = vunpack.c.l.b16 %v563
    %v749 = vunpack.c.h.b16 %v563
    %v750 = vunpack.c.l.b16 %v564
    %v751 = vunpack.c.h.b16 %v564
    %v752 = vunpack.c.l.b16 %v565
    %v753 = vunpack.c.h.b16 %v565
    %v754 = vunpack.c.l.b16 %v566
    %v755 = vunpack.c.h.b16 %v566
    %v756 = vunpack.c.l.b16 %v567
    %v757 = vunpack.c.h.b16 %v567
    %v758 = vunpack.c.l.b16 %v568
    %v759 = vunpack.c.h.b16 %v568
    %v760 = vunpack.c.l.b16 %v569
    %v761 = vunpack.c.h.b16 %v569
    %v762 = vpack.c.b16 %v636, %v634
    %v763 = vpack.c.b16 %v637, %v635
    %v764 = vpack.c.b16 %v640, %v638
    %v765 = vpack.c.b16 %v641, %v639
    %v766 = vpack.c.b16 %v644, %v642
    %v767 = vpack.c.b16 %v645, %v643
    %v768 = vpack.c.b16 %v648, %v646
    %v769 = vpack.c.b16 %v649, %v647
    %v770 = vpack.c.b16 %v652, %v650
    %v771 = vpack.c.b16 %v653, %v651
    %v772 = vpack.c.b16 %v656, %v654
    %v773 = vpack.c.b16 %v657, %v655
    %v774 = vpack.c.b16 %v660, %v658
    %v775 = vpack.c.b16 %v661, %v659
    %v776 = vpack.c.b16 %v664, %v662
    %v777 = vpack.c.b16 %v665, %v663
    %v778 = vpack.c.b16 %v668, %v666
    %v779 = vpack.c.b16 %v669, %v667
    %v780 = vpack.c.b16 %v672, %v670
    %v781 = vpack.c.b16 %v673, %v671
    %v782 = vpack.c.b16 %v676, %v674
    %v783 = vpack.c.b16 %v677, %v675
    %v784 = vpack.c.b16 %v680, %v678
    %v785 = vpack.c.b16 %v681, %v679
    %v786 = vpack.c.b16 %v684, %v682
    %v787 = vpack.c.b16 %v685, %v683
    %v788 = vpack.c.b16 %v688, %v686
    %v789 = vpack.c.b16 %v689, %v687
    %v790 = vpack.c.b16 %v692, %v690
    %v791 = vpack.c.b16 %v693, %v691
    %v792 = vpack.c.b16 %v696, %v694
    %v793 = vpack.c.b16 %v697, %v695
    %v794 = vpack.c.b16 %v700, %v698
    %v795 = vpack.c.b16 %v701, %v699
    %v796 = vpack.c.b16 %v704, %v702
    %v797 = vpack.c.b16 %v705, %v703
    %v798 = vpack.c.b16 %v708, %v706
    %v799 = vpack.c.b16 %v709, %v707
    %v800 = vpack.c.b16 %v712, %v710
    %v801 = vpack.c.b16 %v713, %v711
    %v802 = vpack.c.b16 %v716, %v714
    %v803 = vpack.c.b16 %v717, %v715
    %v804 = vpack.c.b16 %v720, %v718
    %v805 = vpack.c.b16 %v721, %v719
    %v806 = vpack.c.b16 %v724, %v722
    %v807 = vpack.c.b16 %v725, %v723
    %v808 = vpack.c.b16 %v728, %v726
    %v809 = vpack.c.b16 %v729, %v727
    %v810 = vpack.c.b16 %v732, %v730
    %v811 = vpack.c.b16 %v733, %v731
    %v812 = vpack.c.b16 %v736, %v734
    %v813 = vpack.c.b16 %v737, %v735
    %v814 = vpack.c.b16 %v740, %v738
    %v815 = vpack.c.b16 %v741, %v739
    %v816 = vpack.c.b16 %v744, %v742
    %v817 = vpack.c.b16 %v745, %v743
    %v818 = vpack.c.b16 %v748, %v746
    %v819 = vpack.c.b16 %v749, %v747
    %v820 = vpack.c.b16 %v752, %v750
    %v821 = vpack.c.b16 %v753, %v751
    %v822 = vpack.c.b16 %v756, %v754
    %v823 = vpack.c.b16 %v757, %v755
    %v824 = vpack.c.b16 %v760, %v758
    %v825 = vpack.c.b16 %v761, %v759
    %890 = vmatpush.bf16.msra.mxu0 %v776
    %891 = vmatpush.bf16.msra.mxu0 %v774
    %892 = vmatpush.bf16.msra.mxu0 %v772
    %893 = vmatpush.bf16.msra.mxu0 %v770
    %894 = vmatpush.bf16.msra.mxu0 %v768
    %895 = vmatpush.bf16.msra.mxu0 %v766
    %896 = vmatpush.bf16.msra.mxu0 %v764
    %897 = vmatpush.bf16.msra.mxu0 %v762
    %898 = vmatmul.bf16.gmra.mxu0 %v502
    %v899 = vpop.f32.mrf.mxu0
    %v900 = vadd.f32 0.0, %v899
    %v901 = vpop.f32.mrf.mxu0
    %902 = vdwg.mxu0
    %903 = vmatpush.bf16.msra.mxu0 %v792
    %904 = vmatpush.bf16.msra.mxu0 %v790
    %905 = vmatpush.bf16.msra.mxu0 %v788
    %906 = vmatpush.bf16.msra.mxu0 %v786
    %907 = vmatpush.bf16.msra.mxu0 %v784
    %908 = vmatpush.bf16.msra.mxu0 %v782
    %909 = vmatpush.bf16.msra.mxu0 %v780
    %910 = vmatpush.bf16.msra.mxu0 %v778
    %911 = vmatmul.bf16.gmra.mxu0 %v503
    %v912 = vpop.f32.mrf.mxu0
    %v913 = vadd.f32 %v900, %v912
    %v914 = vpop.f32.mrf.mxu0
    %915 = vdwg.mxu0
    %916 = vmatpush.bf16.msra.mxu0 %v808
    %917 = vmatpush.bf16.msra.mxu0 %v806
    %918 = vmatpush.bf16.msra.mxu0 %v804
    %919 = vmatpush.bf16.msra.mxu0 %v802
    %920 = vmatpush.bf16.msra.mxu0 %v800
    %921 = vmatpush.bf16.msra.mxu0 %v798
    %922 = vmatpush.bf16.msra.mxu0 %v796
    %923 = vmatpush.bf16.msra.mxu0 %v794
    %924 = vmatmul.bf16.gmra.mxu0 %v504
    %v925 = vpop.f32.mrf.mxu0
    %v926 = vadd.f32 %v913, %v925
    %v927 = vpop.f32.mrf.mxu0
    %928 = vdwg.mxu0
    %929 = vmatpush.bf16.msra.mxu0 %v824
    %930 = vmatpush.bf16.msra.mxu0 %v822
    %931 = vmatpush.bf16.msra.mxu0 %v820
    %932 = vmatpush.bf16.msra.mxu0 %v818
    %933 = vmatpush.bf16.msra.mxu0 %v816
    %934 = vmatpush.bf16.msra.mxu0 %v814
    %935 = vmatpush.bf16.msra.mxu0 %v812
    %936 = vmatpush.bf16.msra.mxu0 %v810
    %937 = vmatmul.bf16.gmra.mxu0 %v505
    %v938 = vpop.f32.mrf.mxu0
    %v939 = vadd.f32 %v926, %v938
    %v940 = vpop.f32.mrf.mxu0
    %941 = vdwg.mxu0
    %942 = vmatpush.bf16.msra.mxu0 %v777
    %943 = vmatpush.bf16.msra.mxu0 %v775
    %944 = vmatpush.bf16.msra.mxu0 %v773
    %945 = vmatpush.bf16.msra.mxu0 %v771
    %946 = vmatpush.bf16.msra.mxu0 %v769
    %947 = vmatpush.bf16.msra.mxu0 %v767
    %948 = vmatpush.bf16.msra.mxu0 %v765
    %949 = vmatpush.bf16.msra.mxu0 %v763
    %950 = vmatmul.bf16.gmra.mxu0 %v502
    %v951 = vpop.f32.mrf.mxu0
    %v952 = vadd.f32 0.0, %v951
    %v953 = vpop.f32.mrf.mxu0
    %954 = vdwg.mxu0
    %955 = vmatpush.bf16.msra.mxu0 %v793
    %956 = vmatpush.bf16.msra.mxu0 %v791
    %957 = vmatpush.bf16.msra.mxu0 %v789
    %958 = vmatpush.bf16.msra.mxu0 %v787
    %959 = vmatpush.bf16.msra.mxu0 %v785
    %960 = vmatpush.bf16.msra.mxu0 %v783
    %961 = vmatpush.bf16.msra.mxu0 %v781
    %962 = vmatpush.bf16.msra.mxu0 %v779
    %963 = vmatmul.bf16.gmra.mxu0 %v503
    %v964 = vpop.f32.mrf.mxu0
    %v965 = vadd.f32 %v952, %v964
    %v966 = vpop.f32.mrf.mxu0
    %967 = vdwg.mxu0
    %968 = vmatpush.bf16.msra.mxu0 %v809
    %969 = vmatpush.bf16.msra.mxu0 %v807
    %970 = vmatpush.bf16.msra.mxu0 %v805
    %971 = vmatpush.bf16.msra.mxu0 %v803
    %972 = vmatpush.bf16.msra.mxu0 %v801
    %973 = vmatpush.bf16.msra.mxu0 %v799
    %974 = vmatpush.bf16.msra.mxu0 %v797
    %975 = vmatpush.bf16.msra.mxu0 %v795
    %976 = vmatmul.bf16.gmra.mxu0 %v504
    %v977 = vpop.f32.mrf.mxu0
    %v978 = vadd.f32 %v965, %v977
    %v979 = vpop.f32.mrf.mxu0
    %980 = vdwg.mxu0
    %981 = vmatpush.bf16.msra.mxu0 %v825
    %982 = vmatpush.bf16.msra.mxu0 %v823
    %983 = vmatpush.bf16.msra.mxu0 %v821
    %984 = vmatpush.bf16.msra.mxu0 %v819
    %985 = vmatpush.bf16.msra.mxu0 %v817
    %986 = vmatpush.bf16.msra.mxu0 %v815
    %987 = vmatpush.bf16.msra.mxu0 %v813
    %988 = vmatpush.bf16.msra.mxu0 %v811
    %989 = vmatmul.bf16.gmra.mxu0 %v505
    %v990 = vpop.f32.mrf.mxu0
    %v991 = vadd.f32 %v978, %v990
    %v992 = vpop.f32.mrf.mxu0
    %993 = vdwg.mxu0
    %v994 = vmax.f32 %v939, 0.0
    %v995 = vmax.f32 %v991, 0.0
    %v996 = vxor.u32 %v994, 2147483648
    %v997 = vxor.u32 %v995, 2147483648
    %v998 = vmul.f32 %v996, 1.442695
    %v999 = vpow.pop %v998
    %v1000 = vmul.f32 %v997, 1.442695
    %v1001 = vpow.pop %v1000
    %v1002 = vadd.f32 %v999, 1.0
    %v1003 = vadd.f32 %v1001, 1.0
    %v1004 = vrcp.pop %v1002
    %v1005 = vmul.f32 %v1002, %v1004
    %v1006 = vsub.f32 1.0, %v1005
    %v1007 = vmul.f32 %v1004, %v1006
    %v1008 = vadd.f32 %v1004, %v1007
    %vm1009 = vweird.f32 %v1002
    %vm1010 = vweird.f32 %v1004
    %vm1011 = vmor %vm1009, %vm1010
    %v1012 = vsel %vm1011, %v1004, %v1008
    %v1013 = vand.u32 2147483647, %v1002
    %vm1014 = vcmp.eq.f32.partialorder %v1013, 8.507059e+37
    %v1015 = vand.u32 %v1002, 2147483648
    %v1016 = vor.u32 1.1754944e-38, %v1015
    %v1017 = vsel %vm1014, %v1016, %v1012
    %v1018 = vmul.f32 1.0, %v1017
    %v1019 = vrcp.pop %v1003
    %v1020 = vmul.f32 %v1003, %v1019
    %v1021 = vsub.f32 1.0, %v1020
    %v1022 = vmul.f32 %v1019, %v1021
    %v1023 = vadd.f32 %v1019, %v1022
    %vm1024 = vweird.f32 %v1003
    %vm1025 = vweird.f32 %v1019
    %vm1026 = vmor %vm1024, %vm1025
    %v1027 = vsel %vm1026, %v1019, %v1023
    %v1028 = vand.u32 2147483647, %v1003
    %vm1029 = vcmp.eq.f32.partialorder %v1028, 8.507059e+37
    %v1030 = vand.u32 %v1003, 2147483648
    %v1031 = vor.u32 1.1754944e-38, %v1030
    %v1032 = vsel %vm1029, %v1031, %v1027
    %v1033 = vmul.f32 1.0, %v1032
    %v1036 = vrot.slane %v1033, 7
    %vm1037 = vcmask 1040384
    %v1038 = vsel %vm1037, %v1018, %v1036
    %v1039 = vsel %vm489, %v1018, %v1036
    %v1040 = vrot.slane %v1039, 1
    %v1041 = vperm.slane %v1038, 0
    %v1042 = vperm.slane %v1038, 1
    %v1043 = vperm.slane %v1040, 0
    %v1044 = vperm.slane %v1040, 1
    %v1049 = vmul.f32 %v393, %v1041
    %v1050 = vmul.f32 %v394, %v1042
    %v1051 = vmul.f32 %v395, %v1041
    %v1052 = vmul.f32 %v396, %v1042
    %v1053 = vmul.f32 %v397, %v1041
    %v1054 = vmul.f32 %v398, %v1042
    %v1055 = vmul.f32 %v399, %v1041
    %v1056 = vmul.f32 %v400, %v1042
    %v1057 = vmul.f32 %v401, %v1043
    %v1058 = vmul.f32 %v402, %v1044
    %v1059 = vmul.f32 %v403, %v1043
    %v1060 = vmul.f32 %v404, %v1044
    %v1061 = vmul.f32 %v405, %v1043
    %v1062 = vmul.f32 %v406, %v1044
    %v1063 = vmul.f32 %v407, %v1043
    %v1064 = vmul.f32 %v408, %v1044
    %1065 = vst [vmem:[#allocation7] sm:$0xff] %v1049
    %1066 = vst [vmem:[#allocation7 + $0x8] sm:$0xff] %v1050
    %1067 = vst [vmem:[#allocation7 + $0x10] sm:$0xff] %v1051
    %1068 = vst [vmem:[#allocation7 + $0x18] sm:$0xff] %v1052
    %1069 = vst [vmem:[#allocation7 + $0x20] sm:$0xff] %v1053
    %1070 = vst [vmem:[#allocation7 + $0x28] sm:$0xff] %v1054
    %1071 = vst [vmem:[#allocation7 + $0x30] sm:$0xff] %v1055
    %1072 = vst [vmem:[#allocation7 + $0x38] sm:$0xff] %v1056
    %1073 = vst [vmem:[#allocation7 + $0x40] sm:$0xff] %v1057
    %1074 = vst [vmem:[#allocation7 + $0x48] sm:$0xff] %v1058
    %1075 = vst [vmem:[#allocation7 + $0x50] sm:$0xff] %v1059
    %1076 = vst [vmem:[#allocation7 + $0x58] sm:$0xff] %v1060
    %1077 = vst [vmem:[#allocation7 + $0x60] sm:$0xff] %v1061
    %1078 = vst [vmem:[#allocation7 + $0x68] sm:$0xff] %v1062
    %1079 = vst [vmem:[#allocation7 + $0x70] sm:$0xff] %v1063
    %1080 = vst [vmem:[#allocation7 + $0x78] sm:$0xff] %v1064
    // Predicated region
    $region34: #{_cbam_pallas.1} parent=1 // pred_check
      _
    $region35: #{_cbam_pallas.1} parent=1 // pred_check_branch
      %1082 = sbr.rel (0) target = $region37
    $region36: #{_cbam_pallas.1} parent=1 // pred_region
      %1084 = vsyncadd [#allocation4], 0
      %s1085 = sshll.u32 [#allocation7], 4
      %s1086 = int_to_ptr.vmem [resolvable:$true] %s1085
      %s1087 = sshll.u32 %s6, 4
      %s1088 = int_to_ptr.hbm [resolvable:$true] %s1087
      %1093 = dma.vmem_to_hbm [thread:$0]  %s1086, 2048, %s1088, [#allocation4], 256, 256, 16
    $region37: #{_cbam_pallas.1} parent=1 // pred_fallthru
      _
    // Predicated region
    $region38: #{_cbam_pallas.1} parent=1 // pred_check
      _
    $region39: #{_cbam_pallas.1} parent=1 // pred_check_branch
      %1095 = sbr.rel (0) target = $region41
    $region40: #{_cbam_pallas.1} parent=1 // pred_region
      %1097 = dma.done [#allocation4], 2048
    $region41: #{_cbam_pallas.1} parent=1 // pred_fallthru
      _
    %1098 = vsyncpa [#allocation3], 1
    %1099 = vsyncpa [#allocation6], 1
    %1100 = vsyncpa [#allocation4], 1

</llo_original>
